<compile_context>
chip_gen: v7x
topology: tpu7x:2x2x1
jax: 0.10.0
libtpu: 0.0.40
codegen_flags: <defaults>
</compile_context>

<pallas_src>
import functools

import jax
import jax.numpy as jnp
from jax.experimental import pallas as pl
from jax.experimental.pallas import tpu as pltpu

PHASE_BINS = 64        # lookup_tables.N
MAG_BINS = 1024        # lookup_tables.M
MAG_HI = 32            # magnitude factorization: m = 32*hi + lo
MAG_LO = 32
N_COMP = 3             # bf16-magnitude components per f32 table entry
PHASE_TAB_ROWS = 8     # 3 value comps + 3 grad comps + 2 pad
CELLS_PER_STEP = 8     # cells per grid step (one 128-lane segment per cell)


def _adaptive_phase_cell_kernel(idx_ref, buf_ref, ptab_ref, mtab_ref,
                                int_out_ref, f_out_ref,
                                *, adaptation_rate, cells):
    tbd = idx_ref.shape[1]        # cells * vector_dim (flat lane axis)
    dim = tbd // cells

    idx = idx_ref[...]            # [4, tbd] int32: ctx_p, ctx_m, self_p, self_m
    # Modular accumulation.  Indices are normalized to [0, bins) in the wrapper,
    # so the sum lies in [0, 2*bins) and the power-of-two mask equals `%`.
    p = (idx[0:1, :] + idx[2:3, :]) & (PHASE_BINS - 1)        # [1, tbd]
    m = (idx[1:2, :] + idx[3:4, :]) & (MAG_BINS - 1)          # [1, tbd]

    # ---- phase gather on the MXU: [8, 64] bf16 @ [64, tbd] bf16 -> [8, tbd] f32
    # One-hot entries (0/1) are exact in bf16 and accumulation is f32, so the
    # gather is accurate to the bf16-component representation of the table.
    iota_p = jax.lax.broadcasted_iota(jnp.int32, (PHASE_BINS, tbd), 0)
    oh_p = jnp.where(iota_p == p, 1.0, 0.0).astype(jnp.bfloat16)
    pres = jnp.dot(ptab_ref[...], oh_p, preferred_element_type=jnp.float32)
    pc = pres[0:1, :] + pres[1:2, :] + pres[2:3, :]           # phase_cos[p]
    pg = pres[3:4, :] + pres[4:5, :] + pres[5:6, :]           # phase_grad[p]

    # ---- factorized magnitude gather: m = 32*hi + lo
    #   stage 1 (MXU): contract hi against the K-folded table
    #       mres[lo, e]      = mag_val [32*hi[e] + lo]
    #       mres[32+lo, e]   = mag_grad[32*hi[e] + lo]
    #   stage 2 (VPU/XLU, f32): select lo[e] with a one-hot multiply + sublane sum
    hi = m >> 5                                               # [1, tbd] in [0,32)
    lo = m & (MAG_LO - 1)                                     # [1, tbd] in [0,32)
    iota_32 = jax.lax.broadcasted_iota(jnp.int32, (MAG_HI, tbd), 0)
    oh_hi = jnp.where(iota_32 == hi, 1.0, 0.0).astype(jnp.bfloat16)   # [32, tbd]
    oh_hi_rep = jnp.concatenate([oh_hi] * N_COMP, axis=0)             # [96, tbd]
    oh_lo = jnp.where(iota_32 == lo, 1.0, 0.0)                        # [32, tbd] f32
    mres = jnp.dot(mtab_ref[...], oh_hi_rep,
                   preferred_element_type=jnp.float32)                # [64, tbd] f32
    mv = jnp.sum(mres[0:MAG_LO, :] * oh_lo, axis=0, keepdims=True)    # mag_val[m]
    mg = jnp.sum(mres[MAG_LO:2 * MAG_LO, :] * oh_lo, axis=0,
                 keepdims=True)                                       # mag_grad[m]

    # ---- ModularPhaseCell.forward ----
    raw = pc * mv
    raw_abs = jnp.abs(raw)

    # Per-cell strength = sum of |raw| over each cell's 128-lane segment
    # (plain XLU cross-lane reduce in f32), broadcast back over the cell's
    # lanes so it rides in the f32 output slab (no extra tiny output DMA).
    segs = []
    for c in range(cells):
        s = jnp.sum(raw_abs[:, c * dim:(c + 1) * dim], axis=-1, keepdims=True)
        segs.append(jnp.broadcast_to(s, (1, dim)))
    strength_row = jnp.concatenate(segs, axis=-1)             # [1, tbd]

    # ---- AdaptivePhaseCell.forward: sensitivity scaling + EMA buffer update ----
    buf = buf_ref[...]            # [3, tbd]: phase_sens, mag_sens, avg_signal
    ps = buf[0:1, :]
    ms = buf[1:2, :]
    avg = buf[2:3, :]
    signal = raw * (ps * ms)
    gph = pg * mv * ps                                        # grad_phase
    gmg = pc * mg * ms                                        # grad_mag
    alpha = adaptation_rate
    avg_new = (1.0 - alpha) * avg + alpha * jnp.abs(signal)

    # Whole-block stores (one per output slab).
    int_out_ref[...] = jnp.concatenate([p, m], axis=0)                     # [2, tbd]
    f_out_ref[...] = jnp.concatenate(
        [signal, gph, gmg, avg_new, strength_row], axis=0)                 # [5, tbd]
    # TODO(synk): training-mode sensitivity adaptation (underused/overused masks
    # + clamp) is a training-only stateful side effect; eval-mode forward only.


def _split_bf16_components(x):
    """Splits f32 values into N_COMP bf16-magnitude components (f32 dtype)."""
    c0 = x.astype(jnp.bfloat16).astype(jnp.float32)
    c1 = (x - c0).astype(jnp.bfloat16).astype(jnp.float32)
    c2 = (x - c0 - c1).astype(jnp.bfloat16).astype(jnp.float32)
    return [c0, c1, c2]


def pack_lookup_tables(tables):
    """Packs the 1-D f32 tables into bf16 MXU operands.

    Each f32 entry is split into 3 bf16-magnitude components whose f32 sum
    reconstructs the entry to ~2^-24 relative accuracy (close to, but not
    exactly, bit-accurate).  One-hot operands are 0/1 (exact in bf16) and
    accumulation is f32.
    """
    # Phase table [8, 64] bf16: rows 0-2 cos components, 3-5 grad components.
    prows = (_split_bf16_components(tables["phase_cos"])
             + _split_bf16_components(tables["phase_grad"])
             + [jnp.zeros((PHASE_BINS,), jnp.float32)] * 2)
    ptab = jnp.stack(prows, axis=0).astype(jnp.bfloat16)              # [8, 64]

    # Magnitude table [64, 96] bf16, K-folded for the factorized gather:
    #   mtab[lo,      j*32 + h] = comp_j(mag_val )[32*h + lo]
    #   mtab[32 + lo, j*32 + h] = comp_j(mag_grad)[32*h + lo]
    def fold(x):
        c = jnp.stack(_split_bf16_components(x), axis=0)              # [3, 1024]
        c = c.reshape(N_COMP, MAG_HI, MAG_LO)                         # [j, hi, lo]
        return c.transpose(2, 0, 1).reshape(MAG_LO, N_COMP * MAG_HI)  # [lo, j*32+hi]

    mtab = jnp.concatenate([fold(tables["mag_val"]),
                            fold(tables["mag_grad"])],
                           axis=0).astype(jnp.bfloat16)               # [64, 96]
    return ptab, mtab


def adaptive_phase_cell(ctx_phase_idx, ctx_mag_idx, self_phase_idx, self_mag_idx,
                        tables, buffers, adaptation_rate=0.01):
    """Batched eval-mode AdaptivePhaseCell forward.

    Index / buffer args are [B, D] (B independent cells, each with its own
    buffers) or [D] (single cell).  Returns
    (phase_out, mag_out, signal, strength, grad_phase, grad_mag, new_buffers).
    D is assumed to be a multiple of 128 (validated at D=128).
    """
    squeeze = jnp.asarray(ctx_phase_idx).ndim == 1

    def as_batch(x):
        x = jnp.asarray(x)
        return x[None, :] if x.ndim == 1 else x

    # Normalize indices to [0, bins) with Python-style modulo (matches torch `%`
    # even for negative inputs); the kernel then only needs a power-of-two mask.
    ctx_p = as_batch(ctx_phase_idx).astype(jnp.int32) % PHASE_BINS
    ctx_m = as_batch(ctx_mag_idx).astype(jnp.int32) % MAG_BINS
    self_p = as_batch(self_phase_idx).astype(jnp.int32) % PHASE_BINS
    self_m = as_batch(self_mag_idx).astype(jnp.int32) % MAG_BINS
    ps = as_batch(buffers["phase_sensitivity"]).astype(jnp.float32)
    ms = as_batch(buffers["mag_sensitivity"]).astype(jnp.float32)
    avg = as_batch(buffers["average_signal"]).astype(jnp.float32)

    b, d = ctx_p.shape
    tb = CELLS_PER_STEP
    g = -(-b // tb)                    # grid size (8-cell groups)
    bp = g * tb                        # padded batch
    tbd = tb * d                       # flat lane axis per group

    def pack(rows):
        # [B, D] rows -> [G, R, tb*D] with a pure reshape + concat (no transpose);
        # cell t of group i occupies lanes [t*D, (t+1)*D).
        cols = []
        for x in rows:
            if bp != b:
                x = jnp.concatenate([x, jnp.zeros((bp - b, d), x.dtype)], axis=0)
            cols.append(x.reshape(g, 1, tbd))
        return jnp.concatenate(cols, axis=1)

    idx_pack = pack([ctx_p, ctx_m, self_p, self_m])           # [G, 4, tbd] int32
    buf_pack = pack([ps, ms, avg])                            # [G, 3, tbd] f32
    ptab, mtab = pack_lookup_tables(tables)                   # [8,64], [64,96] bf16

    kernel = functools.partial(_adaptive_phase_cell_kernel,
                               adaptation_rate=float(adaptation_rate), cells=tb)
    # VMEM budget: double-buffered I/O blocks ~112 KiB + resident tables ~26 KiB
    # + in-kernel temporaries (one-hots + matmul results) ~2 MiB -> 16 MiB gives
    # ~8x headroom and fits v7x's 64 MiB VMEM comfortably.
    int_out, f_out = pl.pallas_call(
        kernel,
        out_shape=(
            jax.ShapeDtypeStruct((g, 2, tbd), jnp.int32),     # phase_out | mag_out
            jax.ShapeDtypeStruct((g, 5, tbd), jnp.float32),   # sig|gph|gmg|avg|strength
        ),
        grid=(g,),
        in_specs=[
            pl.BlockSpec((None, 4, tbd), lambda i: (i, 0, 0)),
            pl.BlockSpec((None, 3, tbd), lambda i: (i, 0, 0)),
            pl.BlockSpec((PHASE_TAB_ROWS, PHASE_BINS), lambda i: (0, 0)),   # resident
            pl.BlockSpec((2 * MAG_LO, N_COMP * MAG_HI), lambda i: (0, 0)),  # resident
        ],
        out_specs=(
            pl.BlockSpec((None, 2, tbd), lambda i: (i, 0, 0)),
            pl.BlockSpec((None, 5, tbd), lambda i: (i, 0, 0)),
        ),
        compiler_params=pltpu.CompilerParams(
            dimension_semantics=("parallel",),
            vmem_limit_bytes=16 * 1024 * 1024,
        ),
    )(idx_pack, buf_pack, ptab, mtab)

    def unrow(x, r):                   # [G, R, tbd] -> [B, D] (no transpose)
        return x[:, r, :].reshape(bp, d)[:b]

    phase_out = unrow(int_out, 0)
    mag_out = unrow(int_out, 1)
    signal = unrow(f_out, 0)
    grad_phase = unrow(f_out, 1)
    grad_mag = unrow(f_out, 2)
    avg_new = unrow(f_out, 3)
    strength = unrow(f_out, 4)[:, 0]   # strength is broadcast over each cell's lanes

    new_buffers = dict(
        phase_sensitivity=buffers["phase_sensitivity"],   # eval mode: unchanged
        mag_sensitivity=buffers["mag_sensitivity"],
        usage_count=buffers["usage_count"] + 1.0,
        average_signal=avg_new[0] if squeeze else avg_new,
    )
    if squeeze:
        return (phase_out[0], mag_out[0], signal[0], strength[0],
                grad_phase[0], grad_mag[0], new_buffers)
    return phase_out, mag_out, signal, strength, grad_phase, grad_mag, new_buffers


def make_lookup_tables():
    """Deterministic synthetic HighResolutionLookupTables (N=64, M=1024), 1-D f32."""
    n = jnp.arange(PHASE_BINS, dtype=jnp.float32)
    two_pi = 2.0 * jnp.pi
    phase_cos = jnp.cos(two_pi * n / PHASE_BINS)
    phase_grad = -jnp.sin(two_pi * n / PHASE_BINS) * (two_pi / PHASE_BINS)
    mvals = jnp.arange(MAG_BINS, dtype=jnp.float32)
    mag_val = mvals / MAG_BINS
    mag_grad = jnp.full((MAG_BINS,), 1.0 / MAG_BINS, dtype=jnp.float32)
    return dict(phase_cos=phase_cos, phase_grad=phase_grad,
                mag_val=mag_val, mag_grad=mag_grad)


def _reference(ctx_p, ctx_m, self_p, self_m, tables, buffers, alpha):
    """Pure-JAX reference of the eval-mode forward (batched over cells)."""
    p = (ctx_p + self_p) % PHASE_BINS
    m = (ctx_m + self_m) % MAG_BINS
    pc = tables["phase_cos"][p]
    pg = tables["phase_grad"][p]
    mv = tables["mag_val"][m]
    mg = tables["mag_grad"][m]
    raw = pc * mv
    strength = jnp.sum(jnp.abs(raw), axis=-1)
    ps = buffers["phase_sensitivity"]
    ms = buffers["mag_sensitivity"]
    signal = raw * ps * ms
    grad_phase = pg * mv * ps
    grad_mag = pc * mg * ms
    avg = (1 - alpha) * buffers["average_signal"] + alpha * jnp.abs(signal)
    return p, m, signal, strength, grad_phase, grad_mag, avg


if __name__ == "__main__":
    vector_dim = 128
    batch = 16          # 16 independent cells -> grid of 2 eight-cell groups
    key = jax.random.PRNGKey(0)
    k1, k2, k3, k4, k5, k6, k7 = jax.random.split(key, 7)
    ctx_phase_idx = jax.random.randint(k1, (batch, vector_dim), 0, PHASE_BINS,
                                       dtype=jnp.int32)
    ctx_mag_idx = jax.random.randint(k2, (batch, vector_dim), 0, MAG_BINS,
                                     dtype=jnp.int32)
    self_phase_idx = jax.random.randint(k3, (batch, vector_dim), 0, PHASE_BINS,
                                        dtype=jnp.int32)
    self_mag_idx = jax.random.randint(k4, (batch, vector_dim), 0, MAG_BINS,
                                      dtype=jnp.int32)

    tables = make_lookup_tables()
    buffers = dict(
        phase_sensitivity=jax.random.uniform(k5, (batch, vector_dim),
                                             jnp.float32, 0.5, 1.5),
        mag_sensitivity=jax.random.uniform(k6, (batch, vector_dim),
                                           jnp.float32, 0.5, 1.5),
        usage_count=jnp.zeros((batch, vector_dim), jnp.float32),
        average_signal=jax.random.uniform(k7, (batch, vector_dim),
                                          jnp.float32, 0.0, 1.0),
    )

    (phase_out, mag_out, signal, strength, grad_phase, grad_mag, new_buf) = \
        adaptive_phase_cell(ctx_phase_idx, ctx_mag_idx, self_phase_idx,
                            self_mag_idx, tables, buffers, adaptation_rate=0.01)
    jax.block_until_ready((phase_out, mag_out, signal, strength, grad_phase,
                           grad_mag, new_buf["average_signal"]))

    # sanity check against a pure-JAX reference
    rp, rm, rsig, rstr, rgp, rgm, ravg = _reference(
        ctx_phase_idx, ctx_mag_idx, self_phase_idx, self_mag_idx,
        tables, buffers, 0.01)
    assert jnp.array_equal(phase_out, rp), "phase_out mismatch vs reference"
    assert jnp.array_equal(mag_out, rm), "mag_out mismatch vs reference"
    for name, got, want in (
            ("signal", signal, rsig),
            ("strength", strength, rstr),
            ("grad_phase", grad_phase, rgp),
            ("grad_mag", grad_mag, rgm),
            ("average_signal", new_buf["average_signal"], ravg)):
        assert jnp.allclose(got, want, atol=1e-5, rtol=1e-4), \
            f"{name} mismatch vs reference"

    print("KERNEL_OK")
</pallas_src>

<mosaic_0001>
module attributes {stable_mosaic.version = 11 : i64} {
  func.func @_adaptive_phase_cell_kernel(%arg0: i32, %arg1: memref<1x4x1024xi32, #tpu.memory_space<vmem>>, %arg2: memref<1x3x1024xf32, #tpu.memory_space<vmem>>, %arg3: memref<8x64xbf16, #tpu.memory_space<vmem>>, %arg4: memref<64x96xbf16, #tpu.memory_space<vmem>>, %arg5: memref<1x2x1024xi32, #tpu.memory_space<vmem>>, %arg6: memref<1x5x1024xf32, #tpu.memory_space<vmem>>) attributes {dimension_semantics = [#tpu.dimension_semantics<parallel>], iteration_bounds = array<i64: 2>, scalar_prefetch = 0 : i64, scratch_operands = 0 : i64, tpu.core_type = #tpu.core_type<tc>, window_params = [{transform_indices = @transform_0, window_bounds = array<i64: 1, 4, 1024>}, {transform_indices = @transform_1, window_bounds = array<i64: 1, 3, 1024>}, {pipeline_mode = #tpu.pipeline_mode<synchronous>, transform_indices = @transform_2, window_bounds = array<i64: 8, 64>}, {pipeline_mode = #tpu.pipeline_mode<synchronous>, transform_indices = @transform_3, window_bounds = array<i64: 64, 96>}, {transform_indices = @transform_4, window_bounds = array<i64: 1, 2, 1024>}, {transform_indices = @transform_5, window_bounds = array<i64: 1, 5, 1024>}]} {
    %c0 = arith.constant 0 : index
    %c0_0 = arith.constant 0 : index
    %c0_1 = arith.constant 0 : index
    %0 = vector.load %arg1[%c0, %c0_0, %c0_1] : memref<1x4x1024xi32, #tpu.memory_space<vmem>>, vector<1x4x1024xi32>
    %1 = vector.shape_cast %0 : vector<1x4x1024xi32> to vector<4x1024xi32>
    %2 = vector.extract_strided_slice %1 {offsets = [0, 0], sizes = [1, 1024], strides = [1, 1]} : vector<4x1024xi32> to vector<1x1024xi32>
    %3 = vector.extract_strided_slice %1 {offsets = [2, 0], sizes = [1, 1024], strides = [1, 1]} : vector<4x1024xi32> to vector<1x1024xi32>
    %4 = arith.addi %2, %3 : vector<1x1024xi32>
    %c63_i32 = arith.constant 63 : i32
    %5 = vector.broadcast %c63_i32 : i32 to vector<1x1024xi32>
    %6 = arith.andi %4, %5 : vector<1x1024xi32>
    %7 = vector.extract_strided_slice %1 {offsets = [1, 0], sizes = [1, 1024], strides = [1, 1]} : vector<4x1024xi32> to vector<1x1024xi32>
    %8 = vector.extract_strided_slice %1 {offsets = [3, 0], sizes = [1, 1024], strides = [1, 1]} : vector<4x1024xi32> to vector<1x1024xi32>
    %9 = arith.addi %7, %8 : vector<1x1024xi32>
    %c1023_i32 = arith.constant 1023 : i32
    %10 = vector.broadcast %c1023_i32 : i32 to vector<1x1024xi32>
    %11 = arith.andi %9, %10 : vector<1x1024xi32>
    %12 = tpu.iota {dimensions = array<i32: 0>} : vector<64x1024xi32>
    %13 = vector.broadcast %6 : vector<1x1024xi32> to vector<64x1024xi32>
    %14 = arith.cmpi eq, %12, %13 : vector<64x1024xi32>
    %cst = arith.constant 1.000000e+00 : f32
    %cst_2 = arith.constant 0.000000e+00 : f32
    %15 = vector.broadcast %cst : f32 to vector<64x1024xf32>
    %16 = vector.broadcast %cst_2 : f32 to vector<64x1024xf32>
    %17 = arith.select %14, %15, %16 : vector<64x1024xi1>, vector<64x1024xf32>
    %18 = arith.truncf %17 : vector<64x1024xf32> to vector<64x1024xbf16>
    %c0_3 = arith.constant 0 : index
    %c0_4 = arith.constant 0 : index
    %19 = vector.load %arg3[%c0_3, %c0_4] : memref<8x64xbf16, #tpu.memory_space<vmem>>, vector<8x64xbf16>
    %cst_5 = arith.constant dense<0.000000e+00> : vector<8x1024xf32>
    %20 = tpu.matmul %19, %18, %cst_5 {dimension_numbers = #tpu.dot_dimension_numbers<[1], [0], [0], [1], [0, 0, 1, 1], [], []>} : vector<8x64xbf16>, vector<64x1024xbf16>, vector<8x1024xf32> -> vector<8x1024xf32>
    %21 = vector.extract_strided_slice %20 {offsets = [0, 0], sizes = [1, 1024], strides = [1, 1]} : vector<8x1024xf32> to vector<1x1024xf32>
    %22 = vector.extract_strided_slice %20 {offsets = [1, 0], sizes = [1, 1024], strides = [1, 1]} : vector<8x1024xf32> to vector<1x1024xf32>
    %23 = arith.addf %21, %22 : vector<1x1024xf32>
    %24 = vector.extract_strided_slice %20 {offsets = [2, 0], sizes = [1, 1024], strides = [1, 1]} : vector<8x1024xf32> to vector<1x1024xf32>
    %25 = arith.addf %23, %24 : vector<1x1024xf32>
    %26 = vector.extract_strided_slice %20 {offsets = [3, 0], sizes = [1, 1024], strides = [1, 1]} : vector<8x1024xf32> to vector<1x1024xf32>
    %27 = vector.extract_strided_slice %20 {offsets = [4, 0], sizes = [1, 1024], strides = [1, 1]} : vector<8x1024xf32> to vector<1x1024xf32>
    %28 = arith.addf %26, %27 : vector<1x1024xf32>
    %29 = vector.extract_strided_slice %20 {offsets = [5, 0], sizes = [1, 1024], strides = [1, 1]} : vector<8x1024xf32> to vector<1x1024xf32>
    %30 = arith.addf %28, %29 : vector<1x1024xf32>
    %c5_i32 = arith.constant 5 : i32
    %31 = vector.broadcast %c5_i32 : i32 to vector<1x1024xi32>
    %32 = arith.shrsi %11, %31 : vector<1x1024xi32>
    %c31_i32 = arith.constant 31 : i32
    %33 = vector.broadcast %c31_i32 : i32 to vector<1x1024xi32>
    %34 = arith.andi %11, %33 : vector<1x1024xi32>
    %35 = tpu.iota {dimensions = array<i32: 0>} : vector<32x1024xi32>
    %36 = vector.broadcast %32 : vector<1x1024xi32> to vector<32x1024xi32>
    %37 = arith.cmpi eq, %35, %36 : vector<32x1024xi32>
    %cst_6 = arith.constant 1.000000e+00 : f32
    %cst_7 = arith.constant 0.000000e+00 : f32
    %38 = vector.broadcast %cst_6 : f32 to vector<32x1024xf32>
    %39 = vector.broadcast %cst_7 : f32 to vector<32x1024xf32>
    %40 = arith.select %37, %38, %39 : vector<32x1024xi1>, vector<32x1024xf32>
    %41 = arith.truncf %40 : vector<32x1024xf32> to vector<32x1024xbf16>
    %42 = tpu.concatenate %41, %41, %41 in 0 : vector<32x1024xbf16>, vector<32x1024xbf16>, vector<32x1024xbf16> -> vector<96x1024xbf16>
    %43 = vector.broadcast %34 : vector<1x1024xi32> to vector<32x1024xi32>
    %44 = arith.cmpi eq, %35, %43 : vector<32x1024xi32>
    %cst_8 = arith.constant 1.000000e+00 : f32
    %cst_9 = arith.constant 0.000000e+00 : f32
    %45 = vector.broadcast %cst_8 : f32 to vector<32x1024xf32>
    %46 = vector.broadcast %cst_9 : f32 to vector<32x1024xf32>
    %47 = arith.select %44, %45, %46 : vector<32x1024xi1>, vector<32x1024xf32>
    %c0_10 = arith.constant 0 : index
    %c0_11 = arith.constant 0 : index
    %48 = vector.load %arg4[%c0_10, %c0_11] : memref<64x96xbf16, #tpu.memory_space<vmem>>, vector<64x96xbf16>
    %cst_12 = arith.constant dense<0.000000e+00> : vector<64x1024xf32>
    %49 = tpu.matmul %48, %42, %cst_12 {dimension_numbers = #tpu.dot_dimension_numbers<[1], [0], [0], [1], [0, 0, 1, 1], [], []>} : vector<64x96xbf16>, vector<96x1024xbf16>, vector<64x1024xf32> -> vector<64x1024xf32>
    %50 = vector.extract_strided_slice %49 {offsets = [0, 0], sizes = [32, 1024], strides = [1, 1]} : vector<64x1024xf32> to vector<32x1024xf32>
    %51 = arith.mulf %50, %47 : vector<32x1024xf32>
    %cst_13 = arith.constant dense<0.000000e+00> : vector<1024xf32>
    %52 = vector.multi_reduction <add>, %51, %cst_13 [0] : vector<32x1024xf32> to vector<1024xf32>
    %53 = vector.shape_cast %52 : vector<1024xf32> to vector<1x1024xf32>
    %54 = vector.extract_strided_slice %49 {offsets = [32, 0], sizes = [32, 1024], strides = [1, 1]} : vector<64x1024xf32> to vector<32x1024xf32>
    %55 = arith.mulf %54, %47 : vector<32x1024xf32>
    %cst_14 = arith.constant dense<0.000000e+00> : vector<1024xf32>
    %56 = vector.multi_reduction <add>, %55, %cst_14 [0] : vector<32x1024xf32> to vector<1024xf32>
    %57 = vector.shape_cast %56 : vector<1024xf32> to vector<1x1024xf32>
    %58 = arith.mulf %25, %53 : vector<1x1024xf32>
    %59 = math.absf %58 : vector<1x1024xf32>
    %60 = vector.extract_strided_slice %59 {offsets = [0, 0], sizes = [1, 128], strides = [1, 1]} : vector<1x1024xf32> to vector<1x128xf32>
    %cst_15 = arith.constant dense<0.000000e+00> : vector<1xf32>
    %61 = vector.multi_reduction <add>, %60, %cst_15 [1] : vector<1x128xf32> to vector<1xf32>
    %62 = vector.shape_cast %61 : vector<1xf32> to vector<1x1xf32>
    %63 = vector.shape_cast %62 : vector<1x1xf32> to vector<1x1xf32>
    %64 = vector.broadcast %63 : vector<1x1xf32> to vector<1x128xf32>
    %65 = vector.extract_strided_slice %59 {offsets = [0, 128], sizes = [1, 128], strides = [1, 1]} : vector<1x1024xf32> to vector<1x128xf32>
    %cst_16 = arith.constant dense<0.000000e+00> : vector<1xf32>
    %66 = vector.multi_reduction <add>, %65, %cst_16 [1] : vector<1x128xf32> to vector<1xf32>
    %67 = vector.shape_cast %66 : vector<1xf32> to vector<1x1xf32>
    %68 = vector.shape_cast %67 : vector<1x1xf32> to vector<1x1xf32>
    %69 = vector.broadcast %68 : vector<1x1xf32> to vector<1x128xf32>
    %70 = vector.extract_strided_slice %59 {offsets = [0, 256], sizes = [1, 128], strides = [1, 1]} : vector<1x1024xf32> to vector<1x128xf32>
    %cst_17 = arith.constant dense<0.000000e+00> : vector<1xf32>
    %71 = vector.multi_reduction <add>, %70, %cst_17 [1] : vector<1x128xf32> to vector<1xf32>
    %72 = vector.shape_cast %71 : vector<1xf32> to vector<1x1xf32>
    %73 = vector.shape_cast %72 : vector<1x1xf32> to vector<1x1xf32>
    %74 = vector.broadcast %73 : vector<1x1xf32> to vector<1x128xf32>
    %75 = vector.extract_strided_slice %59 {offsets = [0, 384], sizes = [1, 128], strides = [1, 1]} : vector<1x1024xf32> to vector<1x128xf32>
    %cst_18 = arith.constant dense<0.000000e+00> : vector<1xf32>
    %76 = vector.multi_reduction <add>, %75, %cst_18 [1] : vector<1x128xf32> to vector<1xf32>
    %77 = vector.shape_cast %76 : vector<1xf32> to vector<1x1xf32>
    %78 = vector.shape_cast %77 : vector<1x1xf32> to vector<1x1xf32>
    %79 = vector.broadcast %78 : vector<1x1xf32> to vector<1x128xf32>
    %80 = vector.extract_strided_slice %59 {offsets = [0, 512], sizes = [1, 128], strides = [1, 1]} : vector<1x1024xf32> to vector<1x128xf32>
    %cst_19 = arith.constant dense<0.000000e+00> : vector<1xf32>
    %81 = vector.multi_reduction <add>, %80, %cst_19 [1] : vector<1x128xf32> to vector<1xf32>
    %82 = vector.shape_cast %81 : vector<1xf32> to vector<1x1xf32>
    %83 = vector.shape_cast %82 : vector<1x1xf32> to vector<1x1xf32>
    %84 = vector.broadcast %83 : vector<1x1xf32> to vector<1x128xf32>
    %85 = vector.extract_strided_slice %59 {offsets = [0, 640], sizes = [1, 128], strides = [1, 1]} : vector<1x1024xf32> to vector<1x128xf32>
    %cst_20 = arith.constant dense<0.000000e+00> : vector<1xf32>
    %86 = vector.multi_reduction <add>, %85, %cst_20 [1] : vector<1x128xf32> to vector<1xf32>
    %87 = vector.shape_cast %86 : vector<1xf32> to vector<1x1xf32>
    %88 = vector.shape_cast %87 : vector<1x1xf32> to vector<1x1xf32>
    %89 = vector.broadcast %88 : vector<1x1xf32> to vector<1x128xf32>
    %90 = vector.extract_strided_slice %59 {offsets = [0, 768], sizes = [1, 128], strides = [1, 1]} : vector<1x1024xf32> to vector<1x128xf32>
    %cst_21 = arith.constant dense<0.000000e+00> : vector<1xf32>
    %91 = vector.multi_reduction <add>, %90, %cst_21 [1] : vector<1x128xf32> to vector<1xf32>
    %92 = vector.shape_cast %91 : vector<1xf32> to vector<1x1xf32>
    %93 = vector.shape_cast %92 : vector<1x1xf32> to vector<1x1xf32>
    %94 = vector.broadcast %93 : vector<1x1xf32> to vector<1x128xf32>
    %95 = vector.extract_strided_slice %59 {offsets = [0, 896], sizes = [1, 128], strides = [1, 1]} : vector<1x1024xf32> to vector<1x128xf32>
    %cst_22 = arith.constant dense<0.000000e+00> : vector<1xf32>
    %96 = vector.multi_reduction <add>, %95, %cst_22 [1] : vector<1x128xf32> to vector<1xf32>
    %97 = vector.shape_cast %96 : vector<1xf32> to vector<1x1xf32>
    %98 = vector.shape_cast %97 : vector<1x1xf32> to vector<1x1xf32>
    %99 = vector.broadcast %98 : vector<1x1xf32> to vector<1x128xf32>
    %100 = tpu.concatenate %64, %69, %74, %79, %84, %89, %94, %99 in 1 : vector<1x128xf32>, vector<1x128xf32>, vector<1x128xf32>, vector<1x128xf32>, vector<1x128xf32>, vector<1x128xf32>, vector<1x128xf32>, vector<1x128xf32> -> vector<1x1024xf32>
    %c0_23 = arith.constant 0 : index
    %c0_24 = arith.constant 0 : index
    %c0_25 = arith.constant 0 : index
    %101 = vector.load %arg2[%c0_23, %c0_24, %c0_25] : memref<1x3x1024xf32, #tpu.memory_space<vmem>>, vector<1x3x1024xf32>
    %102 = vector.shape_cast %101 : vector<1x3x1024xf32> to vector<3x1024xf32>
    %103 = vector.extract_strided_slice %102 {offsets = [0, 0], sizes = [1, 1024], strides = [1, 1]} : vector<3x1024xf32> to vector<1x1024xf32>
    %104 = vector.extract_strided_slice %102 {offsets = [1, 0], sizes = [1, 1024], strides = [1, 1]} : vector<3x1024xf32> to vector<1x1024xf32>
    %105 = vector.extract_strided_slice %102 {offsets = [2, 0], sizes = [1, 1024], strides = [1, 1]} : vector<3x1024xf32> to vector<1x1024xf32>
    %106 = arith.mulf %103, %104 : vector<1x1024xf32>
    %107 = arith.mulf %58, %106 : vector<1x1024xf32>
    %108 = arith.mulf %30, %53 : vector<1x1024xf32>
    %109 = arith.mulf %108, %103 : vector<1x1024xf32>
    %110 = arith.mulf %25, %57 : vector<1x1024xf32>
    %111 = arith.mulf %110, %104 : vector<1x1024xf32>
    %cst_26 = arith.constant 9.900000e-01 : f32
    %112 = vector.broadcast %cst_26 : f32 to vector<1x1024xf32>
    %113 = arith.mulf %112, %105 : vector<1x1024xf32>
    %114 = math.absf %107 : vector<1x1024xf32>
    %cst_27 = arith.constant 0.00999999977 : f32
    %115 = vector.broadcast %cst_27 : f32 to vector<1x1024xf32>
    %116 = arith.mulf %115, %114 : vector<1x1024xf32>
    %117 = arith.addf %113, %116 : vector<1x1024xf32>
    %118 = tpu.concatenate %6, %11 in 0 : vector<1x1024xi32>, vector<1x1024xi32> -> vector<2x1024xi32>
    %c0_28 = arith.constant 0 : index
    %c0_29 = arith.constant 0 : index
    %c0_30 = arith.constant 0 : index
    %119 = vector.load %arg5[%c0_28, %c0_29, %c0_30] : memref<1x2x1024xi32, #tpu.memory_space<vmem>>, vector<1x2x1024xi32>
    %120 = vector.shape_cast %119 : vector<1x2x1024xi32> to vector<2x1024xi32>
    %121 = vector.shape_cast %118 : vector<2x1024xi32> to vector<1x2x1024xi32>
    tpu.vector_store %arg5[%c0_28, %c0_29, %c0_30], %121 {strides = array<i32>} : memref<1x2x1024xi32, #tpu.memory_space<vmem>>, vector<1x2x1024xi32>,
    %122 = tpu.concatenate %107, %109, %111, %117, %100 in 0 : vector<1x1024xf32>, vector<1x1024xf32>, vector<1x1024xf32>, vector<1x1024xf32>, vector<1x1024xf32> -> vector<5x1024xf32>
    %c0_31 = arith.constant 0 : index
    %c0_32 = arith.constant 0 : index
    %c0_33 = arith.constant 0 : index
    %123 = vector.load %arg6[%c0_31, %c0_32, %c0_33] : memref<1x5x1024xf32, #tpu.memory_space<vmem>>, vector<1x5x1024xf32>
    %124 = vector.shape_cast %123 : vector<1x5x1024xf32> to vector<5x1024xf32>
    %125 = vector.shape_cast %122 : vector<5x1024xf32> to vector<1x5x1024xf32>
    tpu.vector_store %arg6[%c0_31, %c0_32, %c0_33], %125 {strides = array<i32>} : memref<1x5x1024xf32, #tpu.memory_space<vmem>>, vector<1x5x1024xf32>,
    return
  }
  func.func @transform_0(%arg0: i32) -> (i32, i32, i32) {
    %c0_i32 = arith.constant 0 : i32
    %c0_i32_0 = arith.constant 0 : i32
    %c0_i32_1 = arith.constant 0 : i32
    return %arg0, %c0_i32, %c0_i32_0 : i32, i32, i32
  }
  func.func @transform_1(%arg0: i32) -> (i32, i32, i32) {
    %c0_i32 = arith.constant 0 : i32
    %c0_i32_0 = arith.constant 0 : i32
    %c0_i32_1 = arith.constant 0 : i32
    return %arg0, %c0_i32, %c0_i32_0 : i32, i32, i32
  }
  func.func @transform_2(%arg0: i32) -> (i32, i32) {
    %c0_i32 = arith.constant 0 : i32
    %c0_i32_0 = arith.constant 0 : i32
    %c0_i32_1 = arith.constant 0 : i32
    return %c0_i32, %c0_i32_0 : i32, i32
  }
  func.func @transform_3(%arg0: i32) -> (i32, i32) {
    %c0_i32 = arith.constant 0 : i32
    %c0_i32_0 = arith.constant 0 : i32
    %c0_i32_1 = arith.constant 0 : i32
    return %c0_i32, %c0_i32_0 : i32, i32
  }
  func.func @transform_4(%arg0: i32) -> (i32, i32, i32) {
    %c0_i32 = arith.constant 0 : i32
    %c0_i32_0 = arith.constant 0 : i32
    %c0_i32_1 = arith.constant 0 : i32
    return %arg0, %c0_i32, %c0_i32_0 : i32, i32, i32
  }
  func.func @transform_5(%arg0: i32) -> (i32, i32, i32) {
    %c0_i32 = arith.constant 0 : i32
    %c0_i32_0 = arith.constant 0 : i32
    %c0_i32_1 = arith.constant 0 : i32
    return %arg0, %c0_i32, %c0_i32_0 : i32, i32, i32
  }
}

</mosaic_0001>

<llo_original>
// kernel: tpu_custom_call.1
$region0: #{tpu_custom_call.1}
  #allocation0 [shape = 'u32[]', space=smem, size = 0x4, offset = 0x4, fixed_abs, tag = 'smem constant byte address 0x4 - core index']
  #allocation1 [shape = 'u32[144,128]{1,0:T(1,128)}', space=vmem, size = 0x12000, scoped, tag = 'internal scratch']
  %s0 = inlined_call_operand.vmem [shape: s32[2,4,1024], index: 0, kind: input, shape index: {}]
  %s1 = inlined_call_operand.vmem [shape: f32[2,3,1024], index: 1, kind: input, shape index: {}]
  %s2 = inlined_call_operand.vmem [shape: bf16[8,64], index: 2, kind: input, shape index: {}]
  %s3 = inlined_call_operand.vmem [shape: bf16[64,96], index: 3, kind: input, shape index: {}]
  %s4 = inlined_call_operand.hbm [shape: s32[2,2,1024], index: 4, kind: output, shape index: {0}]
  %s5 = inlined_call_operand.vmem [shape: f32[2,5,1024], index: 5, kind: output, shape index: {1}]
  %6 = xla_tuple %s4, %s5
  %s7 = sld [smem:[#allocation0]]
  $region57: #{tpu_custom_call.1} parent=0
    _
  %s9 = ssub.s32 1, %s7
  %s10 = scalar_select 0, %s9, %s7
  $region1: #{tpu_custom_call.1} parent=0
    #allocation2 [shape = 'u8[16384]{0}', space=vmem, size = 0x4000, scoped, tag = 'output window, operand 0']
    #allocation3 [shape = 's32[2]{0}', space=sflag, size = 0x8, scoped, tag = 'scoped memory for tpu_custom_call.1']
    %11 = vsyncpa [#allocation3], 0
    %s12 = scalar_lea.sflag [#allocation3], 1
    %13 = vsyncpa %s12, 0
    loop: start=0, step=1, limit=4
    $region2: #{tpu_custom_call.1} parent=1 // loop_pre_header
      _
    $region3: #{tpu_custom_call.1} parent=1 // loop_header
      %s15 = sphi 0, %s19
      %p16 = scmp.ge.s32.totalorder %s15, 4
      %s25 = sphi 0, %s27
      %s28 = sphi 0, %s25
      %s29 = sphi 0, %s28
      %s45 = sphi 0, %s29
      %s51 = sphi 0, %s53
      %s54 = sphi 0, %s51
      %s55 = sphi 0, %s54
      %s71 = sphi 0, %s55
      %s75 = sphi 0, %s75
      %s77 = sphi 0, %s75
      %s78 = sphi 0, %s77
      %s92 = sphi 0, %s78
      %s96 = sphi 0, %s96
      %s98 = sphi 0, %s96
      %s99 = sphi 0, %s98
      %s113 = sphi 0, %s99
      %s119 = sphi 0, %s121
      %s122 = sphi 0, %s119
      %s123 = sphi 0, %s122
      %s139 = sphi 0, %s123
      %s145 = sphi 0, %s147
      %s148 = sphi 0, %s145
      %s149 = sphi 0, %s148
      %s165 = sphi 0, %s149
    $region4: #{tpu_custom_call.1} parent=1 // loop_header_branch
      %18 = sbr.rel (%p16) target = $region8
    $region5: #{tpu_custom_call.1} parent=1 // loop_body
      %s20 = ssub.s32 %s15, 1
      %s21 = ssub.s32 %s15, 2
      %s22 = sadd.s32 %s15, 1
      %s23 = ssub.s32 %s15, %s22
      %p24 = scmp.eq.s32.totalorder %s23, 0
      %s26 = sadd.s32 %s25, 1
      %s27 = scalar_select %p24, %s25, %s26
      %p30 = pneg %p24
      %p31 = scmp.eq.s32.totalorder %s15, 1
      %p32 = por %p30, %p31
      %p33 = scmp.ne.s32.totalorder %s25, %s28
      %p34 = scmp.eq.s32.totalorder %s15, 0
      %p35 = por %p33, %p34
      %p36 = scmp.ne.s32.totalorder %s25, %s28
      %p37 = scmp.eq.s32.totalorder %s20, 1
      %p38 = por %p36, %p37
      %p39 = scmp.ne.s32.totalorder %s28, %s29
      %p40 = scmp.eq.s32.totalorder %s20, 0
      %p41 = por %p39, %p40
      %p42 = scmp.ne.s32.totalorder %s28, %s29
      %p43 = scmp.eq.s32.totalorder %s21, 1
      %p44 = por %p42, %p43
      %p46 = scmp.ne.s32.totalorder %s29, %s45
      %p47 = scmp.eq.s32.totalorder %s21, 0
      %p48 = por %p46, %p47
      %s49 = ssub.s32 %s15, %s22
      %p50 = scmp.eq.s32.totalorder %s49, 0
      %s52 = sadd.s32 %s51, 1
      %s53 = scalar_select %p50, %s51, %s52
      %p56 = pneg %p50
      %p57 = scmp.eq.s32.totalorder %s15, 1
      %p58 = por %p56, %p57
      %p59 = scmp.ne.s32.totalorder %s51, %s54
      %p60 = scmp.eq.s32.totalorder %s15, 0
      %p61 = por %p59, %p60
      %p62 = scmp.ne.s32.totalorder %s51, %s54
      %p63 = scmp.eq.s32.totalorder %s20, 1
      %p64 = por %p62, %p63
      %p65 = scmp.ne.s32.totalorder %s54, %s55
      %p66 = scmp.eq.s32.totalorder %s20, 0
      %p67 = por %p65, %p66
      %p68 = scmp.ne.s32.totalorder %s54, %s55
      %p69 = scmp.eq.s32.totalorder %s21, 1
      %p70 = por %p68, %p69
      %p72 = scmp.ne.s32.totalorder %s55, %s71
      %p73 = scmp.eq.s32.totalorder %s21, 0
      %p74 = por %p72, %p73
      %s76 = sadd.s32 %s75, 1
      %p79 = scmp.eq.s32.totalorder %s15, 1
      %p80 = scmp.ne.s32.totalorder %s75, %s77
      %p81 = scmp.eq.s32.totalorder %s15, 0
      %p82 = por %p80, %p81
      %p83 = scmp.ne.s32.totalorder %s75, %s77
      %p84 = scmp.eq.s32.totalorder %s20, 1
      %p85 = por %p83, %p84
      %p86 = scmp.ne.s32.totalorder %s77, %s78
      %p87 = scmp.eq.s32.totalorder %s20, 0
      %p88 = por %p86, %p87
      %p89 = scmp.ne.s32.totalorder %s77, %s78
      %p90 = scmp.eq.s32.totalorder %s21, 1
      %p91 = por %p89, %p90
      %p93 = scmp.ne.s32.totalorder %s78, %s92
      %p94 = scmp.eq.s32.totalorder %s21, 0
      %p95 = por %p93, %p94
      %s97 = sadd.s32 %s96, 1
      %p100 = scmp.eq.s32.totalorder %s15, 1
      %p101 = scmp.ne.s32.totalorder %s96, %s98
      %p102 = scmp.eq.s32.totalorder %s15, 0
      %p103 = por %p101, %p102
      %p104 = scmp.ne.s32.totalorder %s96, %s98
      %p105 = scmp.eq.s32.totalorder %s20, 1
      %p106 = por %p104, %p105
      %p107 = scmp.ne.s32.totalorder %s98, %s99
      %p108 = scmp.eq.s32.totalorder %s20, 0
      %p109 = por %p107, %p108
      %p110 = scmp.ne.s32.totalorder %s98, %s99
      %p111 = scmp.eq.s32.totalorder %s21, 1
      %p112 = por %p110, %p111
      %p114 = scmp.ne.s32.totalorder %s99, %s113
      %p115 = scmp.eq.s32.totalorder %s21, 0
      %p116 = por %p114, %p115
      %s117 = ssub.s32 %s15, %s22
      %p118 = scmp.eq.s32.totalorder %s117, 0
      %s120 = sadd.s32 %s119, 1
      %s121 = scalar_select %p118, %s119, %s120
      %p124 = pneg %p118
      %p125 = scmp.eq.s32.totalorder %s15, 1
      %p126 = por %p124, %p125
      %p127 = scmp.ne.s32.totalorder %s119, %s122
      %p128 = scmp.eq.s32.totalorder %s15, 0
      %p129 = por %p127, %p128
      %p130 = scmp.ne.s32.totalorder %s119, %s122
      %p131 = scmp.eq.s32.totalorder %s20, 1
      %p132 = por %p130, %p131
      %p133 = scmp.ne.s32.totalorder %s122, %s123
      %p134 = scmp.eq.s32.totalorder %s20, 0
      %p135 = por %p133, %p134
      %p136 = scmp.ne.s32.totalorder %s122, %s123
      %p137 = scmp.eq.s32.totalorder %s21, 1
      %p138 = por %p136, %p137
      %p140 = scmp.ne.s32.totalorder %s123, %s139
      %p141 = scmp.eq.s32.totalorder %s21, 0
      %p142 = por %p140, %p141
      %s143 = ssub.s32 %s15, %s22
      %p144 = scmp.eq.s32.totalorder %s143, 0
      %s146 = sadd.s32 %s145, 1
      %s147 = scalar_select %p144, %s145, %s146
      %p150 = pneg %p144
      %p151 = scmp.eq.s32.totalorder %s15, 1
      %p152 = por %p150, %p151
      %p153 = scmp.ne.s32.totalorder %s145, %s148
      %p154 = scmp.eq.s32.totalorder %s15, 0
      %p155 = por %p153, %p154
      %p156 = scmp.ne.s32.totalorder %s145, %s148
      %p157 = scmp.eq.s32.totalorder %s20, 1
      %p158 = por %p156, %p157
      %p159 = scmp.ne.s32.totalorder %s148, %s149
      %p160 = scmp.eq.s32.totalorder %s20, 0
      %p161 = por %p159, %p160
      %p162 = scmp.ne.s32.totalorder %s148, %s149
      %p163 = scmp.eq.s32.totalorder %s21, 1
      %p164 = por %p162, %p163
      %p166 = scmp.ne.s32.totalorder %s149, %s165
      %p167 = scmp.eq.s32.totalorder %s21, 0
      %p168 = por %p166, %p167
      %p169 = scmp.le.s32.totalorder 1, %s15
      %p170 = scmp.lt.s32.totalorder %s15, 3
      %p171 = pnand %p169, %p170
      %p172 = pneg %p171
      // Predicated region
      $region9: #{tpu_custom_call.1} parent=5 // pred_check
        _
      $region10: #{tpu_custom_call.1} parent=5 // pred_check_branch
        %174 = sbr.rel (%p171) target = $region12
      $region11: #{tpu_custom_call.1} parent=5 // pred_region
        %s175 = ssub.s32 %s15, 1
        // Predicated region
        $region13: #{tpu_custom_call.1} parent=11 // pred_check
          %p176 = pneg %p88
        $region14: #{tpu_custom_call.1} parent=11 // pred_check_branch
          %178 = sbr.rel (%p176) target = $region16
        $region15: #{tpu_custom_call.1} parent=11 // pred_region
          _
        $region16: #{tpu_custom_call.1} parent=11 // pred_fallthru
          _
        // Predicated region
        $region17: #{tpu_custom_call.1} parent=11 // pred_check
          %p179 = pneg %p109
        $region18: #{tpu_custom_call.1} parent=11 // pred_check_branch
          %181 = sbr.rel (%p179) target = $region20
        $region19: #{tpu_custom_call.1} parent=11 // pred_region
          _
        $region20: #{tpu_custom_call.1} parent=11 // pred_fallthru
          _
      $region12: #{tpu_custom_call.1} parent=5 // pred_fallthru
        _
      %p182 = scmp.lt.s32.totalorder %s15, 2
      // Predicated region
      $region21: #{tpu_custom_call.1} parent=5 // pred_check
        %p183 = pneg %p182
      $region22: #{tpu_custom_call.1} parent=5 // pred_check_branch
        %185 = sbr.rel (%p183) target = $region24
      $region23: #{tpu_custom_call.1} parent=5 // pred_region
        // Predicated region
        $region25: #{tpu_custom_call.1} parent=23 // pred_check
          %p186 = pneg %p35
        $region26: #{tpu_custom_call.1} parent=23 // pred_check_branch
          %188 = sbr.rel (%p186) target = $region28
        $region27: #{tpu_custom_call.1} parent=23 // pred_region
          %p189 = scmp.lt.s32.totalorder %s15, 1
          %s190 = scalar_select %p189, %s15, 1
          %s191 = smul.addr %s190, 8
          %s192 = smul.addr %s191, 4
          %s193 = scalar_lea.vmem %s0, %s192
        $region28: #{tpu_custom_call.1} parent=23 // pred_fallthru
          _
        // Predicated region
        $region29: #{tpu_custom_call.1} parent=23 // pred_check
          %p194 = pneg %p61
        $region30: #{tpu_custom_call.1} parent=23 // pred_check_branch
          %196 = sbr.rel (%p194) target = $region32
        $region31: #{tpu_custom_call.1} parent=23 // pred_region
          %p197 = scmp.lt.s32.totalorder %s15, 1
          %s198 = scalar_select %p197, %s15, 1
          %s199 = smul.addr %s198, 8
          %s200 = smul.addr %s199, 4
          %s201 = scalar_lea.vmem %s1, %s200
        $region32: #{tpu_custom_call.1} parent=23 // pred_fallthru
          _
      $region24: #{tpu_custom_call.1} parent=5 // pred_fallthru
        _
      %p202 = scmp.le.s32.totalorder 1, %s15
      %p203 = scmp.lt.s32.totalorder %s15, 3
      %p204 = pnand %p202, %p203
      %p205 = pneg %p204
      // Predicated region
      $region33: #{tpu_custom_call.1} parent=5 // pred_check
        _
      $region34: #{tpu_custom_call.1} parent=5 // pred_check_branch
        %207 = sbr.rel (%p204) target = $region36
      $region35: #{tpu_custom_call.1} parent=5 // pred_region
        %s208 = ssub.s32 %s15, 1
        %p209 = scmp.lt.s32.totalorder %s20, 1
        %s210 = scalar_select %p209, %s20, 1
        %s211 = smul.addr %s210, 8
        %s212 = smul.addr %s211, 4
        %s213 = scalar_lea.vmem %s0, %s212
        %p214 = pneg %p41
        %p215 = pneg %p38
        %p216 = scmp.lt.s32.totalorder %s20, 1
        %s217 = scalar_select %p216, %s20, 1
        %s218 = smul.addr %s217, 8
        %s219 = smul.addr %s218, 4
        %s220 = scalar_lea.vmem %s1, %s219
        %p221 = pneg %p67
        %p222 = pneg %p64
        %p223 = pneg %p88
        %p224 = pneg %p85
        %p225 = pneg %p109
        %p226 = pneg %p106
        %p227 = pneg %p135
        %p228 = pneg %p132
        %s229 = sand.u32 %s122, 1
        %s230 = scalar_lea.sflag [#allocation3], %s229
        %s231 = sand.u32 %s122, 1
        %s232 = smul.addr %s231, 16
        %s233 = scalar_lea.vmem [#allocation2], %s232
        %p234 = pneg %p161
        %p235 = pneg %p158
        %p236 = scmp.lt.s32.totalorder %s20, 1
        %s237 = scalar_select %p236, %s20, 1
        %s238 = smul.addr %s237, 8
        %s239 = smul.addr %s238, 8
        %s240 = scalar_lea.vmem %s5, %s239
        %p241 = scmp.lt.s32.totalorder %s20, 1
        %s242 = scalar_select %p241, %s20, 1
        %s243 = smul.addr %s242, 8
        %s244 = smul.addr %s243, 4
        %s245 = scalar_lea.vmem %s0, %s244
        %p246 = scmp.lt.s32.totalorder %s20, 1
        %s247 = scalar_select %p246, %s20, 1
        %s248 = smul.addr %s247, 8
        %s249 = smul.addr %s248, 4
        %s250 = scalar_lea.vmem %s1, %s249
        %p251 = scmp.lt.s32.totalorder %s20, 1
        %s252 = scalar_select %p251, %s20, 1
        %s253 = smul.addr %s252, 8
        %s254 = smul.addr %s253, 8
        %s255 = scalar_lea.vmem %s5, %s254
        %v257 = vld [vmem:[%s245] sm:$0xff]
        %v258 = vld [vmem:[%s245 + $0x8] sm:$0xff]
        %v259 = vld [vmem:[%s245 + $0x10] sm:$0xff]
        %v260 = vld [vmem:[%s245 + $0x18] sm:$0xff]
        %v261 = vrot.slane %v257, 6
        %v262 = vrot.slane %v261, 4
        %v263 = vrot.slane %v258, 6
        %v264 = vrot.slane %v263, 4
        %v265 = vrot.slane %v259, 6
        %v266 = vrot.slane %v265, 4
        %v267 = vrot.slane %v260, 6
        %v268 = vrot.slane %v267, 4
        %v269 = vadd.s32 %v257, %v262
        %v270 = vadd.s32 %v258, %v264
        %v271 = vadd.s32 %v259, %v266
        %v272 = vadd.s32 %v260, %v268
        %v273 = vand.u32 %v269, 63
        %v274 = vand.u32 %v270, 63
        %v275 = vand.u32 %v271, 63
        %v276 = vand.u32 %v272, 63
        %v277 = vand.u32 %v269, 1023
        %v278 = vand.u32 %v270, 1023
        %v279 = vand.u32 %v271, 1023
        %v280 = vand.u32 %v272, 1023
        %v281 = vlaneseq
        %v282 = vshrl.u32 %v281, 7
        %v283 = vadd.s32 %v282, 8
        %v284 = vadd.s32 %v282, 16
        %v285 = vadd.s32 %v282, 24
        %v286 = vadd.s32 %v282, 32
        %v287 = vadd.s32 %v282, 40
        %v288 = vadd.s32 %v282, 48
        %v289 = vadd.s32 %v282, 56
        %v290 = vlaneseq
        %v291 = vshrl.u32 %v290, 7
        %v292 = vsub.s32 0, %v291
        %v293 = vrot.slane %v273, %v292
        %v294 = vlaneseq
        %v295 = vshrl.u32 %v294, 7
        %v296 = vsub.s32 4, %v295
        %v297 = vrot.slane %v273, %v296
        %v298 = vlaneseq
        %v299 = vshrl.u32 %v298, 7
        %v300 = vsub.s32 0, %v299
        %v301 = vrot.slane %v274, %v300
        %v302 = vlaneseq
        %v303 = vshrl.u32 %v302, 7
        %v304 = vsub.s32 4, %v303
        %v305 = vrot.slane %v274, %v304
        %v306 = vlaneseq
        %v307 = vshrl.u32 %v306, 7
        %v308 = vsub.s32 0, %v307
        %v309 = vrot.slane %v275, %v308
        %v310 = vlaneseq
        %v311 = vshrl.u32 %v310, 7
        %v312 = vsub.s32 4, %v311
        %v313 = vrot.slane %v275, %v312
        %v314 = vlaneseq
        %v315 = vshrl.u32 %v314, 7
        %v316 = vsub.s32 0, %v315
        %v317 = vrot.slane %v276, %v316
        %v318 = vlaneseq
        %v319 = vshrl.u32 %v318, 7
        %v320 = vsub.s32 4, %v319
        %v321 = vrot.slane %v276, %v320
        %v322 = vlaneseq
        %v323 = vshrl.u32 %v322, 7
        %v324 = vsub.s32 0, %v323
        %v325 = vrot.slane %v293, %v324
        %v326 = vlaneseq
        %v327 = vshrl.u32 %v326, 7
        %v328 = vsub.s32 0, %v327
        %v329 = vrot.slane %v297, %v328
        %v330 = vlaneseq
        %v331 = vshrl.u32 %v330, 7
        %v332 = vsub.s32 0, %v331
        %v333 = vrot.slane %v301, %v332
        %v334 = vlaneseq
        %v335 = vshrl.u32 %v334, 7
        %v336 = vsub.s32 0, %v335
        %v337 = vrot.slane %v305, %v336
        %v338 = vlaneseq
        %v339 = vshrl.u32 %v338, 7
        %v340 = vsub.s32 0, %v339
        %v341 = vrot.slane %v309, %v340
        %v342 = vlaneseq
        %v343 = vshrl.u32 %v342, 7
        %v344 = vsub.s32 0, %v343
        %v345 = vrot.slane %v313, %v344
        %v346 = vlaneseq
        %v347 = vshrl.u32 %v346, 7
        %v348 = vsub.s32 0, %v347
        %v349 = vrot.slane %v317, %v348
        %v350 = vlaneseq
        %v351 = vshrl.u32 %v350, 7
        %v352 = vsub.s32 0, %v351
        %v353 = vrot.slane %v321, %v352
        %vm354 = vcmp.eq.s32.totalorder %v282, %v325
        %vm355 = vcmp.eq.s32.totalorder %v282, %v329
        %vm356 = vcmp.eq.s32.totalorder %v282, %v333
        %vm357 = vcmp.eq.s32.totalorder %v282, %v337
        %vm358 = vcmp.eq.s32.totalorder %v282, %v341
        %vm359 = vcmp.eq.s32.totalorder %v282, %v345
        %vm360 = vcmp.eq.s32.totalorder %v282, %v349
        %vm361 = vcmp.eq.s32.totalorder %v282, %v353
        %vm362 = vcmp.eq.s32.totalorder %v283, %v325
        %vm363 = vcmp.eq.s32.totalorder %v283, %v329
        %vm364 = vcmp.eq.s32.totalorder %v283, %v333
        %vm365 = vcmp.eq.s32.totalorder %v283, %v337
        %vm366 = vcmp.eq.s32.totalorder %v283, %v341
        %vm367 = vcmp.eq.s32.totalorder %v283, %v345
        %vm368 = vcmp.eq.s32.totalorder %v283, %v349
        %vm369 = vcmp.eq.s32.totalorder %v283, %v353
        %vm370 = vcmp.eq.s32.totalorder %v284, %v325
        %vm371 = vcmp.eq.s32.totalorder %v284, %v329
        %vm372 = vcmp.eq.s32.totalorder %v284, %v333
        %vm373 = vcmp.eq.s32.totalorder %v284, %v337
        %vm374 = vcmp.eq.s32.totalorder %v284, %v341
        %vm375 = vcmp.eq.s32.totalorder %v284, %v345
        %vm376 = vcmp.eq.s32.totalorder %v284, %v349
        %vm377 = vcmp.eq.s32.totalorder %v284, %v353
        %vm378 = vcmp.eq.s32.totalorder %v285, %v325
        %vm379 = vcmp.eq.s32.totalorder %v285, %v329
        %vm380 = vcmp.eq.s32.totalorder %v285, %v333
        %vm381 = vcmp.eq.s32.totalorder %v285, %v337
        %vm382 = vcmp.eq.s32.totalorder %v285, %v341
        %vm383 = vcmp.eq.s32.totalorder %v285, %v345
        %vm384 = vcmp.eq.s32.totalorder %v285, %v349
        %vm385 = vcmp.eq.s32.totalorder %v285, %v353
        %vm386 = vcmp.eq.s32.totalorder %v286, %v325
        %vm387 = vcmp.eq.s32.totalorder %v286, %v329
        %vm388 = vcmp.eq.s32.totalorder %v286, %v333
        %vm389 = vcmp.eq.s32.totalorder %v286, %v337
        %vm390 = vcmp.eq.s32.totalorder %v286, %v341
        %vm391 = vcmp.eq.s32.totalorder %v286, %v345
        %vm392 = vcmp.eq.s32.totalorder %v286, %v349
        %vm393 = vcmp.eq.s32.totalorder %v286, %v353
        %vm394 = vcmp.eq.s32.totalorder %v287, %v325
        %vm395 = vcmp.eq.s32.totalorder %v287, %v329
        %vm396 = vcmp.eq.s32.totalorder %v287, %v333
        %vm397 = vcmp.eq.s32.totalorder %v287, %v337
        %vm398 = vcmp.eq.s32.totalorder %v287, %v341
        %vm399 = vcmp.eq.s32.totalorder %v287, %v345
        %vm400 = vcmp.eq.s32.totalorder %v287, %v349
        %vm401 = vcmp.eq.s32.totalorder %v287, %v353
        %vm402 = vcmp.eq.s32.totalorder %v288, %v325
        %vm403 = vcmp.eq.s32.totalorder %v288, %v329
        %vm404 = vcmp.eq.s32.totalorder %v288, %v333
        %vm405 = vcmp.eq.s32.totalorder %v288, %v337
        %vm406 = vcmp.eq.s32.totalorder %v288, %v341
        %vm407 = vcmp.eq.s32.totalorder %v288, %v345
        %vm408 = vcmp.eq.s32.totalorder %v288, %v349
        %vm409 = vcmp.eq.s32.totalorder %v288, %v353
        %vm410 = vcmp.eq.s32.totalorder %v289, %v325
        %vm411 = vcmp.eq.s32.totalorder %v289, %v329
        %vm412 = vcmp.eq.s32.totalorder %v289, %v333
        %vm413 = vcmp.eq.s32.totalorder %v289, %v337
        %vm414 = vcmp.eq.s32.totalorder %v289, %v341
        %vm415 = vcmp.eq.s32.totalorder %v289, %v345
        %vm416 = vcmp.eq.s32.totalorder %v289, %v349
        %vm417 = vcmp.eq.s32.totalorder %v289, %v353
        %v418 = vsel %vm354, 1.0, 0.0
        %v419 = vsel %vm355, 1.0, 0.0
        %v420 = vsel %vm356, 1.0, 0.0
        %v421 = vsel %vm357, 1.0, 0.0
        %v422 = vsel %vm358, 1.0, 0.0
        %v423 = vsel %vm359, 1.0, 0.0
        %v424 = vsel %vm360, 1.0, 0.0
        %v425 = vsel %vm361, 1.0, 0.0
        %v426 = vsel %vm362, 1.0, 0.0
        %v427 = vsel %vm363, 1.0, 0.0
        %v428 = vsel %vm364, 1.0, 0.0
        %v429 = vsel %vm365, 1.0, 0.0
        %v430 = vsel %vm366, 1.0, 0.0
        %v431 = vsel %vm367, 1.0, 0.0
        %v432 = vsel %vm368, 1.0, 0.0
        %v433 = vsel %vm369, 1.0, 0.0
        %v434 = vsel %vm370, 1.0, 0.0
        %v435 = vsel %vm371, 1.0, 0.0
        %v436 = vsel %vm372, 1.0, 0.0
        %v437 = vsel %vm373, 1.0, 0.0
        %v438 = vsel %vm374, 1.0, 0.0
        %v439 = vsel %vm375, 1.0, 0.0
        %v440 = vsel %vm376, 1.0, 0.0
        %v441 = vsel %vm377, 1.0, 0.0
        %v442 = vsel %vm378, 1.0, 0.0
        %v443 = vsel %vm379, 1.0, 0.0
        %v444 = vsel %vm380, 1.0, 0.0
        %v445 = vsel %vm381, 1.0, 0.0
        %v446 = vsel %vm382, 1.0, 0.0
        %v447 = vsel %vm383, 1.0, 0.0
        %v448 = vsel %vm384, 1.0, 0.0
        %v449 = vsel %vm385, 1.0, 0.0
        %v450 = vsel %vm386, 1.0, 0.0
        %v451 = vsel %vm387, 1.0, 0.0
        %v452 = vsel %vm388, 1.0, 0.0
        %v453 = vsel %vm389, 1.0, 0.0
        %v454 = vsel %vm390, 1.0, 0.0
        %v455 = vsel %vm391, 1.0, 0.0
        %v456 = vsel %vm392, 1.0, 0.0
        %v457 = vsel %vm393, 1.0, 0.0
        %v458 = vsel %vm394, 1.0, 0.0
        %v459 = vsel %vm395, 1.0, 0.0
        %v460 = vsel %vm396, 1.0, 0.0
        %v461 = vsel %vm397, 1.0, 0.0
        %v462 = vsel %vm398, 1.0, 0.0
        %v463 = vsel %vm399, 1.0, 0.0
        %v464 = vsel %vm400, 1.0, 0.0
        %v465 = vsel %vm401, 1.0, 0.0
        %v466 = vsel %vm402, 1.0, 0.0
        %v467 = vsel %vm403, 1.0, 0.0
        %v468 = vsel %vm404, 1.0, 0.0
        %v469 = vsel %vm405, 1.0, 0.0
        %v470 = vsel %vm406, 1.0, 0.0
        %v471 = vsel %vm407, 1.0, 0.0
        %v472 = vsel %vm408, 1.0, 0.0
        %v473 = vsel %vm409, 1.0, 0.0
        %v474 = vsel %vm410, 1.0, 0.0
        %v475 = vsel %vm411, 1.0, 0.0
        %v476 = vsel %vm412, 1.0, 0.0
        %v477 = vsel %vm413, 1.0, 0.0
        %v478 = vsel %vm414, 1.0, 0.0
        %v479 = vsel %vm415, 1.0, 0.0
        %v480 = vsel %vm416, 1.0, 0.0
        %v481 = vsel %vm417, 1.0, 0.0
        %v482 = vpack.c.bf16 %v426, %v418
        %v483 = vpack.c.bf16 %v427, %v419
        %v484 = vpack.c.bf16 %v428, %v420
        %v485 = vpack.c.bf16 %v429, %v421
        %v486 = vpack.c.bf16 %v430, %v422
        %v487 = vpack.c.bf16 %v431, %v423
        %v488 = vpack.c.bf16 %v432, %v424
        %v489 = vpack.c.bf16 %v433, %v425
        %v490 = vpack.c.bf16 %v442, %v434
        %v491 = vpack.c.bf16 %v443, %v435
        %v492 = vpack.c.bf16 %v444, %v436
        %v493 = vpack.c.bf16 %v445, %v437
        %v494 = vpack.c.bf16 %v446, %v438
        %v495 = vpack.c.bf16 %v447, %v439
        %v496 = vpack.c.bf16 %v448, %v440
        %v497 = vpack.c.bf16 %v449, %v441
        %v498 = vpack.c.bf16 %v458, %v450
        %v499 = vpack.c.bf16 %v459, %v451
        %v500 = vpack.c.bf16 %v460, %v452
        %v501 = vpack.c.bf16 %v461, %v453
        %v502 = vpack.c.bf16 %v462, %v454
        %v503 = vpack.c.bf16 %v463, %v455
        %v504 = vpack.c.bf16 %v464, %v456
        %v505 = vpack.c.bf16 %v465, %v457
        %v506 = vpack.c.bf16 %v474, %v466
        %v507 = vpack.c.bf16 %v475, %v467
        %v508 = vpack.c.bf16 %v476, %v468
        %v509 = vpack.c.bf16 %v477, %v469
        %v510 = vpack.c.bf16 %v478, %v470
        %v511 = vpack.c.bf16 %v479, %v471
        %v512 = vpack.c.bf16 %v480, %v472
        %v513 = vpack.c.bf16 %v481, %v473
        %v514 = vld [vmem:[%s2] sm:$0xf]
        %vm515 = vcmask 523264
        %v517 = vsel %vm515, %v514, 0
        %519 = vmatprep.subr.bf16.mxu0 %v483
        %520 = vmatpush1.bf16.msra.mxu0 %v482
        %521 = vmatprep.subr.bf16.mxu0 %v491
        %522 = vmatpush1.bf16.msra.mxu0 %v490
        %523 = vmatprep.subr.bf16.mxu0 %v499
        %524 = vmatpush1.bf16.msra.mxu0 %v498
        %525 = vmatprep.subr.bf16.mxu0 %v507
        %526 = vmatpush1.bf16.msra.mxu0 %v506
        %527 = vmatprep.subr.bf16.mxu0 0
        %528 = vmatpush1.bf16.msra.mxu0 0
        %529 = vmatprep.subr.bf16.mxu0 0
        %530 = vmatpush1.bf16.msra.mxu0 0
        %531 = vmatprep.subr.bf16.mxu0 0
        %532 = vmatpush1.bf16.msra.mxu0 0
        %533 = vmatprep.subr.bf16.mxu0 0
        %534 = vmatpush1.bf16.msra.mxu0 0
        %535 = vmatprep.subr.bf16.mxu0 0
        %536 = vmatpush1.bf16.msra.mxu0 0
        %537 = vmatprep.subr.bf16.mxu0 0
        %538 = vmatpush1.bf16.msra.mxu0 0
        %539 = vmatprep.subr.bf16.mxu0 0
        %540 = vmatpush1.bf16.msra.mxu0 0
        %541 = vmatprep.subr.bf16.mxu0 0
        %542 = vmatpush1.bf16.msra.mxu0 0
        %543 = vmatprep.subr.bf16.mxu0 0
        %544 = vmatpush1.bf16.msra.mxu0 0
        %545 = vmatprep.subr.bf16.mxu0 0
        %546 = vmatpush1.bf16.msra.mxu0 0
        %547 = vmatprep.subr.bf16.mxu0 0
        %548 = vmatpush1.bf16.msra.mxu0 0
        %549 = vmatprep.subr.bf16.mxu0 0
        %550 = vmatpush1.bf16.msra.mxu0 0
        %551 = vmatprep.mubr.bf16.mxu0 0
        %552 = vmatmul.mubr.bf16.gmra.mrb[0].mxu0 %v517
        %v553 = vpop.f32.mrb[0].mxu0
        %v554 = vadd.f32 0.0, %v553
        %v555 = vpop.f32.mrb[0].mxu0
        %v556 = vadd.f32 0.0, %v555
        %v557 = vpop.f32.mrb[0].mxu0
        %v558 = vpop.f32.mrb[0].mxu0
        %559 = vdwg.mxu0
        %560 = vmatprep.subr.bf16.mxu0 %v485
        %561 = vmatpush1.bf16.msra.mxu0 %v484
        %562 = vmatprep.subr.bf16.mxu0 %v493
        %563 = vmatpush1.bf16.msra.mxu0 %v492
        %564 = vmatprep.subr.bf16.mxu0 %v501
        %565 = vmatpush1.bf16.msra.mxu0 %v500
        %566 = vmatprep.subr.bf16.mxu0 %v509
        %567 = vmatpush1.bf16.msra.mxu0 %v508
        %568 = vmatprep.subr.bf16.mxu0 0
        %569 = vmatpush1.bf16.msra.mxu0 0
        %570 = vmatprep.subr.bf16.mxu0 0
        %571 = vmatpush1.bf16.msra.mxu0 0
        %572 = vmatprep.subr.bf16.mxu0 0
        %573 = vmatpush1.bf16.msra.mxu0 0
        %574 = vmatprep.subr.bf16.mxu0 0
        %575 = vmatpush1.bf16.msra.mxu0 0
        %576 = vmatprep.subr.bf16.mxu0 0
        %577 = vmatpush1.bf16.msra.mxu0 0
        %578 = vmatprep.subr.bf16.mxu0 0
        %579 = vmatpush1.bf16.msra.mxu0 0
        %580 = vmatprep.subr.bf16.mxu0 0
        %581 = vmatpush1.bf16.msra.mxu0 0
        %582 = vmatprep.subr.bf16.mxu0 0
        %583 = vmatpush1.bf16.msra.mxu0 0
        %584 = vmatprep.subr.bf16.mxu0 0
        %585 = vmatpush1.bf16.msra.mxu0 0
        %586 = vmatprep.subr.bf16.mxu0 0
        %587 = vmatpush1.bf16.msra.mxu0 0
        %588 = vmatprep.subr.bf16.mxu0 0
        %589 = vmatpush1.bf16.msra.mxu0 0
        %590 = vmatprep.subr.bf16.mxu0 0
        %591 = vmatpush1.bf16.msra.mxu0 0
        %592 = vmatprep.mubr.bf16.mxu0 0
        %593 = vmatmul.mubr.bf16.gmra.mrb[0].mxu0 %v517
        %v594 = vpop.f32.mrb[0].mxu0
        %v595 = vadd.f32 0.0, %v594
        %v596 = vpop.f32.mrb[0].mxu0
        %v597 = vadd.f32 0.0, %v596
        %v598 = vpop.f32.mrb[0].mxu0
        %v599 = vpop.f32.mrb[0].mxu0
        %600 = vdwg.mxu0
        %601 = vmatprep.subr.bf16.mxu0 %v487
        %602 = vmatpush1.bf16.msra.mxu0 %v486
        %603 = vmatprep.subr.bf16.mxu0 %v495
        %604 = vmatpush1.bf16.msra.mxu0 %v494
        %605 = vmatprep.subr.bf16.mxu0 %v503
        %606 = vmatpush1.bf16.msra.mxu0 %v502
        %607 = vmatprep.subr.bf16.mxu0 %v511
        %608 = vmatpush1.bf16.msra.mxu0 %v510
        %609 = vmatprep.subr.bf16.mxu0 0
        %610 = vmatpush1.bf16.msra.mxu0 0
        %611 = vmatprep.subr.bf16.mxu0 0
        %612 = vmatpush1.bf16.msra.mxu0 0
        %613 = vmatprep.subr.bf16.mxu0 0
        %614 = vmatpush1.bf16.msra.mxu0 0
        %615 = vmatprep.subr.bf16.mxu0 0
        %616 = vmatpush1.bf16.msra.mxu0 0
        %617 = vmatprep.subr.bf16.mxu0 0
        %618 = vmatpush1.bf16.msra.mxu0 0
        %619 = vmatprep.subr.bf16.mxu0 0
        %620 = vmatpush1.bf16.msra.mxu0 0
        %621 = vmatprep.subr.bf16.mxu0 0
        %622 = vmatpush1.bf16.msra.mxu0 0
        %623 = vmatprep.subr.bf16.mxu0 0
        %624 = vmatpush1.bf16.msra.mxu0 0
        %625 = vmatprep.subr.bf16.mxu0 0
        %626 = vmatpush1.bf16.msra.mxu0 0
        %627 = vmatprep.subr.bf16.mxu0 0
        %628 = vmatpush1.bf16.msra.mxu0 0
        %629 = vmatprep.subr.bf16.mxu0 0
        %630 = vmatpush1.bf16.msra.mxu0 0
        %631 = vmatprep.subr.bf16.mxu0 0
        %632 = vmatpush1.bf16.msra.mxu0 0
        %633 = vmatprep.mubr.bf16.mxu0 0
        %634 = vmatmul.mubr.bf16.gmra.mrb[0].mxu0 %v517
        %v635 = vpop.f32.mrb[0].mxu0
        %v636 = vadd.f32 0.0, %v635
        %v637 = vpop.f32.mrb[0].mxu0
        %v638 = vadd.f32 0.0, %v637
        %v639 = vpop.f32.mrb[0].mxu0
        %v640 = vpop.f32.mrb[0].mxu0
        %641 = vdwg.mxu0
        %642 = vmatprep.subr.bf16.mxu0 %v489
        %643 = vmatpush1.bf16.msra.mxu0 %v488
        %644 = vmatprep.subr.bf16.mxu0 %v497
        %645 = vmatpush1.bf16.msra.mxu0 %v496
        %646 = vmatprep.subr.bf16.mxu0 %v505
        %647 = vmatpush1.bf16.msra.mxu0 %v504
        %648 = vmatprep.subr.bf16.mxu0 %v513
        %649 = vmatpush1.bf16.msra.mxu0 %v512
        %650 = vmatprep.subr.bf16.mxu0 0
        %651 = vmatpush1.bf16.msra.mxu0 0
        %652 = vmatprep.subr.bf16.mxu0 0
        %653 = vmatpush1.bf16.msra.mxu0 0
        %654 = vmatprep.subr.bf16.mxu0 0
        %655 = vmatpush1.bf16.msra.mxu0 0
        %656 = vmatprep.subr.bf16.mxu0 0
        %657 = vmatpush1.bf16.msra.mxu0 0
        %658 = vmatprep.subr.bf16.mxu0 0
        %659 = vmatpush1.bf16.msra.mxu0 0
        %660 = vmatprep.subr.bf16.mxu0 0
        %661 = vmatpush1.bf16.msra.mxu0 0
        %662 = vmatprep.subr.bf16.mxu0 0
        %663 = vmatpush1.bf16.msra.mxu0 0
        %664 = vmatprep.subr.bf16.mxu0 0
        %665 = vmatpush1.bf16.msra.mxu0 0
        %666 = vmatprep.subr.bf16.mxu0 0
        %667 = vmatpush1.bf16.msra.mxu0 0
        %668 = vmatprep.subr.bf16.mxu0 0
        %669 = vmatpush1.bf16.msra.mxu0 0
        %670 = vmatprep.subr.bf16.mxu0 0
        %671 = vmatpush1.bf16.msra.mxu0 0
        %672 = vmatprep.subr.bf16.mxu0 0
        %673 = vmatpush1.bf16.msra.mxu0 0
        %674 = vmatprep.mubr.bf16.mxu0 0
        %675 = vmatmul.mubr.bf16.gmra.mrb[0].mxu0 %v517
        %v676 = vpop.f32.mrb[0].mxu0
        %v677 = vadd.f32 0.0, %v676
        %v678 = vpop.f32.mrb[0].mxu0
        %v679 = vadd.f32 0.0, %v678
        %v680 = vpop.f32.mrb[0].mxu0
        %v681 = vpop.f32.mrb[0].mxu0
        %682 = vdwg.mxu0
        %v691 = vrot.slane %v554, 1
        %v692 = vrot.slane %v556, 1
        %v693 = vrot.slane %v595, 1
        %v694 = vrot.slane %v597, 1
        %v695 = vrot.slane %v636, 1
        %v696 = vrot.slane %v638, 1
        %v697 = vrot.slane %v677, 1
        %v698 = vrot.slane %v679, 1
        %v707 = vadd.f32 %v554, %v691
        %v708 = vadd.f32 %v556, %v692
        %v709 = vadd.f32 %v595, %v693
        %v710 = vadd.f32 %v597, %v694
        %v711 = vadd.f32 %v636, %v695
        %v712 = vadd.f32 %v638, %v696
        %v713 = vadd.f32 %v677, %v697
        %v714 = vadd.f32 %v679, %v698
        %v715 = vrot.slane %v554, 2
        %v716 = vrot.slane %v556, 2
        %v717 = vrot.slane %v595, 2
        %v718 = vrot.slane %v597, 2
        %v719 = vrot.slane %v636, 2
        %v720 = vrot.slane %v638, 2
        %v721 = vrot.slane %v677, 2
        %v722 = vrot.slane %v679, 2
        %v731 = vadd.f32 %v707, %v715
        %v732 = vadd.f32 %v708, %v716
        %v733 = vadd.f32 %v709, %v717
        %v734 = vadd.f32 %v710, %v718
        %v735 = vadd.f32 %v711, %v719
        %v736 = vadd.f32 %v712, %v720
        %v737 = vadd.f32 %v713, %v721
        %v738 = vadd.f32 %v714, %v722
        %v739 = vshra.s32 %v277, 5
        %v740 = vshra.s32 %v278, 5
        %v741 = vshra.s32 %v279, 5
        %v742 = vshra.s32 %v280, 5
        %v743 = vand.u32 %v277, 31
        %v744 = vand.u32 %v278, 31
        %v745 = vand.u32 %v279, 31
        %v746 = vand.u32 %v280, 31
        %v747 = vlaneseq
        %v748 = vshrl.u32 %v747, 7
        %v749 = vsub.s32 1, %v748
        %v750 = vrot.slane %v739, %v749
        %v751 = vlaneseq
        %v752 = vshrl.u32 %v751, 7
        %v753 = vsub.s32 5, %v752
        %v754 = vrot.slane %v739, %v753
        %v755 = vlaneseq
        %v756 = vshrl.u32 %v755, 7
        %v757 = vsub.s32 1, %v756
        %v758 = vrot.slane %v740, %v757
        %v759 = vlaneseq
        %v760 = vshrl.u32 %v759, 7
        %v761 = vsub.s32 5, %v760
        %v762 = vrot.slane %v740, %v761
        %v763 = vlaneseq
        %v764 = vshrl.u32 %v763, 7
        %v765 = vsub.s32 1, %v764
        %v766 = vrot.slane %v741, %v765
        %v767 = vlaneseq
        %v768 = vshrl.u32 %v767, 7
        %v769 = vsub.s32 5, %v768
        %v770 = vrot.slane %v741, %v769
        %v771 = vlaneseq
        %v772 = vshrl.u32 %v771, 7
        %v773 = vsub.s32 1, %v772
        %v774 = vrot.slane %v742, %v773
        %v775 = vlaneseq
        %v776 = vshrl.u32 %v775, 7
        %v777 = vsub.s32 5, %v776
        %v778 = vrot.slane %v742, %v777
        %v779 = vlaneseq
        %v780 = vshrl.u32 %v779, 7
        %v781 = vsub.s32 1, %v780
        %v782 = vrot.slane %v750, %v781
        %v783 = vlaneseq
        %v784 = vshrl.u32 %v783, 7
        %v785 = vsub.s32 1, %v784
        %v786 = vrot.slane %v754, %v785
        %v787 = vlaneseq
        %v788 = vshrl.u32 %v787, 7
        %v789 = vsub.s32 1, %v788
        %v790 = vrot.slane %v758, %v789
        %v791 = vlaneseq
        %v792 = vshrl.u32 %v791, 7
        %v793 = vsub.s32 1, %v792
        %v794 = vrot.slane %v762, %v793
        %v795 = vlaneseq
        %v796 = vshrl.u32 %v795, 7
        %v797 = vsub.s32 1, %v796
        %v798 = vrot.slane %v766, %v797
        %v799 = vlaneseq
        %v800 = vshrl.u32 %v799, 7
        %v801 = vsub.s32 1, %v800
        %v802 = vrot.slane %v770, %v801
        %v803 = vlaneseq
        %v804 = vshrl.u32 %v803, 7
        %v805 = vsub.s32 1, %v804
        %v806 = vrot.slane %v774, %v805
        %v807 = vlaneseq
        %v808 = vshrl.u32 %v807, 7
        %v809 = vsub.s32 1, %v808
        %v810 = vrot.slane %v778, %v809
        %vm811 = vcmp.eq.s32.totalorder %v282, %v782
        %vm812 = vcmp.eq.s32.totalorder %v282, %v786
        %vm813 = vcmp.eq.s32.totalorder %v282, %v790
        %vm814 = vcmp.eq.s32.totalorder %v282, %v794
        %vm815 = vcmp.eq.s32.totalorder %v282, %v798
        %vm816 = vcmp.eq.s32.totalorder %v282, %v802
        %vm817 = vcmp.eq.s32.totalorder %v282, %v806
        %vm818 = vcmp.eq.s32.totalorder %v282, %v810
        %vm819 = vcmp.eq.s32.totalorder %v283, %v782
        %vm820 = vcmp.eq.s32.totalorder %v283, %v786
        %vm821 = vcmp.eq.s32.totalorder %v283, %v790
        %vm822 = vcmp.eq.s32.totalorder %v283, %v794
        %vm823 = vcmp.eq.s32.totalorder %v283, %v798
        %vm824 = vcmp.eq.s32.totalorder %v283, %v802
        %vm825 = vcmp.eq.s32.totalorder %v283, %v806
        %vm826 = vcmp.eq.s32.totalorder %v283, %v810
        %vm827 = vcmp.eq.s32.totalorder %v284, %v782
        %vm828 = vcmp.eq.s32.totalorder %v284, %v786
        %vm829 = vcmp.eq.s32.totalorder %v284, %v790
        %vm830 = vcmp.eq.s32.totalorder %v284, %v794
        %vm831 = vcmp.eq.s32.totalorder %v284, %v798
        %vm832 = vcmp.eq.s32.totalorder %v284, %v802
        %vm833 = vcmp.eq.s32.totalorder %v284, %v806
        %vm834 = vcmp.eq.s32.totalorder %v284, %v810
        %vm835 = vcmp.eq.s32.totalorder %v285, %v782
        %vm836 = vcmp.eq.s32.totalorder %v285, %v786
        %vm837 = vcmp.eq.s32.totalorder %v285, %v790
        %vm838 = vcmp.eq.s32.totalorder %v285, %v794
        %vm839 = vcmp.eq.s32.totalorder %v285, %v798
        %vm840 = vcmp.eq.s32.totalorder %v285, %v802
        %vm841 = vcmp.eq.s32.totalorder %v285, %v806
        %vm842 = vcmp.eq.s32.totalorder %v285, %v810
        %v843 = vsel %vm811, 1.0, 0.0
        %v844 = vsel %vm812, 1.0, 0.0
        %v845 = vsel %vm813, 1.0, 0.0
        %v846 = vsel %vm814, 1.0, 0.0
        %v847 = vsel %vm815, 1.0, 0.0
        %v848 = vsel %vm816, 1.0, 0.0
        %v849 = vsel %vm817, 1.0, 0.0
        %v850 = vsel %vm818, 1.0, 0.0
        %v851 = vsel %vm819, 1.0, 0.0
        %v852 = vsel %vm820, 1.0, 0.0
        %v853 = vsel %vm821, 1.0, 0.0
        %v854 = vsel %vm822, 1.0, 0.0
        %v855 = vsel %vm823, 1.0, 0.0
        %v856 = vsel %vm824, 1.0, 0.0
        %v857 = vsel %vm825, 1.0, 0.0
        %v858 = vsel %vm826, 1.0, 0.0
        %v859 = vsel %vm827, 1.0, 0.0
        %v860 = vsel %vm828, 1.0, 0.0
        %v861 = vsel %vm829, 1.0, 0.0
        %v862 = vsel %vm830, 1.0, 0.0
        %v863 = vsel %vm831, 1.0, 0.0
        %v864 = vsel %vm832, 1.0, 0.0
        %v865 = vsel %vm833, 1.0, 0.0
        %v866 = vsel %vm834, 1.0, 0.0
        %v867 = vsel %vm835, 1.0, 0.0
        %v868 = vsel %vm836, 1.0, 0.0
        %v869 = vsel %vm837, 1.0, 0.0
        %v870 = vsel %vm838, 1.0, 0.0
        %v871 = vsel %vm839, 1.0, 0.0
        %v872 = vsel %vm840, 1.0, 0.0
        %v873 = vsel %vm841, 1.0, 0.0
        %v874 = vsel %vm842, 1.0, 0.0
        %v875 = vpack.c.bf16 %v851, %v843
        %v876 = vpack.c.bf16 %v852, %v844
        %v877 = vpack.c.bf16 %v853, %v845
        %v878 = vpack.c.bf16 %v854, %v846
        %v879 = vpack.c.bf16 %v855, %v847
        %v880 = vpack.c.bf16 %v856, %v848
        %v881 = vpack.c.bf16 %v857, %v849
        %v882 = vpack.c.bf16 %v858, %v850
        %v883 = vpack.c.bf16 %v867, %v859
        %v884 = vpack.c.bf16 %v868, %v860
        %v885 = vpack.c.bf16 %v869, %v861
        %v886 = vpack.c.bf16 %v870, %v862
        %v887 = vpack.c.bf16 %v871, %v863
        %v888 = vpack.c.bf16 %v872, %v864
        %v889 = vpack.c.bf16 %v873, %v865
        %v890 = vpack.c.bf16 %v874, %v866
        %v891 = vlaneseq
        %v892 = vshrl.u32 %v891, 7
        %v893 = vsub.s32 1, %v892
        %v894 = vrot.slane %v743, %v893
        %v895 = vlaneseq
        %v896 = vshrl.u32 %v895, 7
        %v897 = vsub.s32 5, %v896
        %v898 = vrot.slane %v743, %v897
        %v899 = vlaneseq
        %v900 = vshrl.u32 %v899, 7
        %v901 = vsub.s32 1, %v900
        %v902 = vrot.slane %v744, %v901
        %v903 = vlaneseq
        %v904 = vshrl.u32 %v903, 7
        %v905 = vsub.s32 5, %v904
        %v906 = vrot.slane %v744, %v905
        %v907 = vlaneseq
        %v908 = vshrl.u32 %v907, 7
        %v909 = vsub.s32 1, %v908
        %v910 = vrot.slane %v745, %v909
        %v911 = vlaneseq
        %v912 = vshrl.u32 %v911, 7
        %v913 = vsub.s32 5, %v912
        %v914 = vrot.slane %v745, %v913
        %v915 = vlaneseq
        %v916 = vshrl.u32 %v915, 7
        %v917 = vsub.s32 1, %v916
        %v918 = vrot.slane %v746, %v917
        %v919 = vlaneseq
        %v920 = vshrl.u32 %v919, 7
        %v921 = vsub.s32 5, %v920
        %v922 = vrot.slane %v746, %v921
        %v923 = vlaneseq
        %v924 = vshrl.u32 %v923, 7
        %v925 = vsub.s32 1, %v924
        %v926 = vrot.slane %v894, %v925
        %v927 = vlaneseq
        %v928 = vshrl.u32 %v927, 7
        %v929 = vsub.s32 1, %v928
        %v930 = vrot.slane %v898, %v929
        %v931 = vlaneseq
        %v932 = vshrl.u32 %v931, 7
        %v933 = vsub.s32 1, %v932
        %v934 = vrot.slane %v902, %v933
        %v935 = vlaneseq
        %v936 = vshrl.u32 %v935, 7
        %v937 = vsub.s32 1, %v936
        %v938 = vrot.slane %v906, %v937
        %v939 = vlaneseq
        %v940 = vshrl.u32 %v939, 7
        %v941 = vsub.s32 1, %v940
        %v942 = vrot.slane %v910, %v941
        %v943 = vlaneseq
        %v944 = vshrl.u32 %v943, 7
        %v945 = vsub.s32 1, %v944
        %v946 = vrot.slane %v914, %v945
        %v947 = vlaneseq
        %v948 = vshrl.u32 %v947, 7
        %v949 = vsub.s32 1, %v948
        %v950 = vrot.slane %v918, %v949
        %v951 = vlaneseq
        %v952 = vshrl.u32 %v951, 7
        %v953 = vsub.s32 1, %v952
        %v954 = vrot.slane %v922, %v953
        %vm955 = vcmp.eq.s32.totalorder %v282, %v926
        %vm956 = vcmp.eq.s32.totalorder %v282, %v930
        %vm957 = vcmp.eq.s32.totalorder %v282, %v934
        %vm958 = vcmp.eq.s32.totalorder %v282, %v938
        %vm959 = vcmp.eq.s32.totalorder %v282, %v942
        %vm960 = vcmp.eq.s32.totalorder %v282, %v946
        %vm961 = vcmp.eq.s32.totalorder %v282, %v950
        %vm962 = vcmp.eq.s32.totalorder %v282, %v954
        %vm963 = vcmp.eq.s32.totalorder %v283, %v926
        %vm964 = vcmp.eq.s32.totalorder %v283, %v930
        %vm965 = vcmp.eq.s32.totalorder %v283, %v934
        %vm966 = vcmp.eq.s32.totalorder %v283, %v938
        %vm967 = vcmp.eq.s32.totalorder %v283, %v942
        %vm968 = vcmp.eq.s32.totalorder %v283, %v946
        %vm969 = vcmp.eq.s32.totalorder %v283, %v950
        %vm970 = vcmp.eq.s32.totalorder %v283, %v954
        %vm971 = vcmp.eq.s32.totalorder %v284, %v926
        %vm972 = vcmp.eq.s32.totalorder %v284, %v930
        %vm973 = vcmp.eq.s32.totalorder %v284, %v934
        %vm974 = vcmp.eq.s32.totalorder %v284, %v938
        %vm975 = vcmp.eq.s32.totalorder %v284, %v942
        %vm976 = vcmp.eq.s32.totalorder %v284, %v946
        %vm977 = vcmp.eq.s32.totalorder %v284, %v950
        %vm978 = vcmp.eq.s32.totalorder %v284, %v954
        %vm979 = vcmp.eq.s32.totalorder %v285, %v926
        %vm980 = vcmp.eq.s32.totalorder %v285, %v930
        %vm981 = vcmp.eq.s32.totalorder %v285, %v934
        %vm982 = vcmp.eq.s32.totalorder %v285, %v938
        %vm983 = vcmp.eq.s32.totalorder %v285, %v942
        %vm984 = vcmp.eq.s32.totalorder %v285, %v946
        %vm985 = vcmp.eq.s32.totalorder %v285, %v950
        %vm986 = vcmp.eq.s32.totalorder %v285, %v954
        %v987 = vsel %vm955, 1.0, 0.0
        %v988 = vsel %vm956, 1.0, 0.0
        %v989 = vsel %vm957, 1.0, 0.0
        %v990 = vsel %vm958, 1.0, 0.0
        %v991 = vsel %vm959, 1.0, 0.0
        %v992 = vsel %vm960, 1.0, 0.0
        %v993 = vsel %vm961, 1.0, 0.0
        %v994 = vsel %vm962, 1.0, 0.0
        %v995 = vsel %vm963, 1.0, 0.0
        %v996 = vsel %vm964, 1.0, 0.0
        %v997 = vsel %vm965, 1.0, 0.0
        %v998 = vsel %vm966, 1.0, 0.0
        %v999 = vsel %vm967, 1.0, 0.0
        %v1000 = vsel %vm968, 1.0, 0.0
        %v1001 = vsel %vm969, 1.0, 0.0
        %v1002 = vsel %vm970, 1.0, 0.0
        %v1003 = vsel %vm971, 1.0, 0.0
        %v1004 = vsel %vm972, 1.0, 0.0
        %v1005 = vsel %vm973, 1.0, 0.0
        %v1006 = vsel %vm974, 1.0, 0.0
        %v1007 = vsel %vm975, 1.0, 0.0
        %v1008 = vsel %vm976, 1.0, 0.0
        %v1009 = vsel %vm977, 1.0, 0.0
        %v1010 = vsel %vm978, 1.0, 0.0
        %v1011 = vsel %vm979, 1.0, 0.0
        %v1012 = vsel %vm980, 1.0, 0.0
        %v1013 = vsel %vm981, 1.0, 0.0
        %v1014 = vsel %vm982, 1.0, 0.0
        %v1015 = vsel %vm983, 1.0, 0.0
        %v1016 = vsel %vm984, 1.0, 0.0
        %v1017 = vsel %vm985, 1.0, 0.0
        %v1018 = vsel %vm986, 1.0, 0.0
        %v1019 = vld [vmem:[%s3] sm:$0xf]
        %v1020 = vld [vmem:[%s3 + $0x4] sm:$0xf]
        %v1021 = vld [vmem:[%s3 + $0x8] sm:$0xf]
        %v1022 = vld [vmem:[%s3 + $0xc] sm:$0xf]
        %v1023 = vld [vmem:[%s3 + $0x10] sm:$0xf]
        %v1024 = vld [vmem:[%s3 + $0x14] sm:$0xf]
        %v1025 = vld [vmem:[%s3 + $0x18] sm:$0xf]
        %v1026 = vld [vmem:[%s3 + $0x1c] sm:$0xf]
        %v1035 = vunpack.c.l.b16 %v1019
        %v1036 = vunpack.c.l.b16 %v1020
        %v1037 = vunpack.c.l.b16 %v1021
        %v1038 = vunpack.c.l.b16 %v1022
        %v1039 = vunpack.c.l.b16 %v1023
        %v1040 = vunpack.c.l.b16 %v1024
        %v1041 = vunpack.c.l.b16 %v1025
        %v1042 = vunpack.c.l.b16 %v1026
        %v1043 = vpack.c.b16 %v1036, %v1035
        %v1044 = vpack.c.b16 %v1038, %v1037
        %v1045 = vpack.c.b16 %v1040, %v1039
        %v1046 = vpack.c.b16 %v1042, %v1041
        %vm1047 = vcmask 785408
        %v1049 = vsel %vm1047, %v1043, 0
        %v1052 = vsel %vm1047, %v1044, 0
        %v1055 = vsel %vm1047, %v1045, 0
        %v1058 = vsel %vm1047, %v1046, 0
        %1060 = vmatprep.subr.bf16.mxu0 %v876
        %1061 = vmatpush1.bf16.msra.mxu0 %v875
        %1062 = vmatprep.subr.bf16.mxu0 %v884
        %1063 = vmatpush1.bf16.msra.mxu0 %v883
        %1064 = vmatprep.subr.bf16.mxu0 %v876
        %1065 = vmatpush1.bf16.msra.mxu0 %v875
        %1066 = vmatprep.subr.bf16.mxu0 %v884
        %1067 = vmatpush1.bf16.msra.mxu0 %v883
        %1068 = vmatprep.subr.bf16.mxu0 %v876
        %1069 = vmatpush1.bf16.msra.mxu0 %v875
        %1070 = vmatprep.subr.bf16.mxu0 %v884
        %1071 = vmatpush1.bf16.msra.mxu0 %v883
        %1072 = vmatprep.subr.bf16.mxu0 0
        %1073 = vmatpush1.bf16.msra.mxu0 0
        %1074 = vmatprep.subr.bf16.mxu0 0
        %1075 = vmatpush1.bf16.msra.mxu0 0
        %1076 = vmatprep.subr.bf16.mxu0 0
        %1077 = vmatpush1.bf16.msra.mxu0 0
        %1078 = vmatprep.subr.bf16.mxu0 0
        %1079 = vmatpush1.bf16.msra.mxu0 0
        %1080 = vmatprep.subr.bf16.mxu0 0
        %1081 = vmatpush1.bf16.msra.mxu0 0
        %1082 = vmatprep.subr.bf16.mxu0 0
        %1083 = vmatpush1.bf16.msra.mxu0 0
        %1084 = vmatprep.subr.bf16.mxu0 0
        %1085 = vmatpush1.bf16.msra.mxu0 0
        %1086 = vmatprep.subr.bf16.mxu0 0
        %1087 = vmatpush1.bf16.msra.mxu0 0
        %1088 = vmatprep.subr.bf16.mxu0 0
        %1089 = vmatpush1.bf16.msra.mxu0 0
        %1090 = vmatprep.subr.bf16.mxu0 0
        %1091 = vmatpush1.bf16.msra.mxu0 0
        %1092 = vmatprep.mubr.bf16.mxu0 0
        %1093 = vmatmul.mubr.bf16.gmra.mrb[0].mxu0 %v1049
        %v1094 = vpop.f32.mrb[0].mxu0
        %v1095 = vadd.f32 0.0, %v1094
        %v1096 = vpop.f32.mrb[0].mxu0
        %v1097 = vadd.f32 0.0, %v1096
        %v1098 = vpop.f32.mrb[0].mxu0
        %v1099 = vadd.f32 0.0, %v1098
        %v1100 = vpop.f32.mrb[0].mxu0
        %v1101 = vadd.f32 0.0, %v1100
        %1102 = vmatprep.mubr.bf16.mxu0 0
        %1103 = vmatmul.mubr.bf16.gmra.mrb[0].mxu0 %v1052
        %v1104 = vpop.f32.mrb[0].mxu0
        %v1105 = vadd.f32 0.0, %v1104
        %v1106 = vpop.f32.mrb[0].mxu0
        %v1107 = vadd.f32 0.0, %v1106
        %v1108 = vpop.f32.mrb[0].mxu0
        %v1109 = vadd.f32 0.0, %v1108
        %v1110 = vpop.f32.mrb[0].mxu0
        %v1111 = vadd.f32 0.0, %v1110
        %1112 = vmatprep.mubr.bf16.mxu0 0
        %1113 = vmatmul.mubr.bf16.gmra.mrb[0].mxu0 %v1055
        %v1114 = vpop.f32.mrb[0].mxu0
        %v1115 = vadd.f32 0.0, %v1114
        %v1116 = vpop.f32.mrb[0].mxu0
        %v1117 = vadd.f32 0.0, %v1116
        %v1118 = vpop.f32.mrb[0].mxu0
        %v1119 = vadd.f32 0.0, %v1118
        %v1120 = vpop.f32.mrb[0].mxu0
        %v1121 = vadd.f32 0.0, %v1120
        %1122 = vmatprep.mubr.bf16.mxu0 0
        %1123 = vmatmul.mubr.bf16.gmra.mrb[0].mxu0 %v1058
        %v1124 = vpop.f32.mrb[0].mxu0
        %v1125 = vadd.f32 0.0, %v1124
        %v1126 = vpop.f32.mrb[0].mxu0
        %v1127 = vadd.f32 0.0, %v1126
        %v1128 = vpop.f32.mrb[0].mxu0
        %v1129 = vadd.f32 0.0, %v1128
        %v1130 = vpop.f32.mrb[0].mxu0
        %v1131 = vadd.f32 0.0, %v1130
        %1132 = vdwg.mxu0
        %1133 = vmatprep.subr.bf16.mxu0 %v878
        %1134 = vmatpush1.bf16.msra.mxu0 %v877
        %1135 = vmatprep.subr.bf16.mxu0 %v886
        %1136 = vmatpush1.bf16.msra.mxu0 %v885
        %1137 = vmatprep.subr.bf16.mxu0 %v878
        %1138 = vmatpush1.bf16.msra.mxu0 %v877
        %1139 = vmatprep.subr.bf16.mxu0 %v886
        %1140 = vmatpush1.bf16.msra.mxu0 %v885
        %1141 = vmatprep.subr.bf16.mxu0 %v878
        %1142 = vmatpush1.bf16.msra.mxu0 %v877
        %1143 = vmatprep.subr.bf16.mxu0 %v886
        %1144 = vmatpush1.bf16.msra.mxu0 %v885
        %1145 = vmatprep.subr.bf16.mxu0 0
        %1146 = vmatpush1.bf16.msra.mxu0 0
        %1147 = vmatprep.subr.bf16.mxu0 0
        %1148 = vmatpush1.bf16.msra.mxu0 0
        %1149 = vmatprep.subr.bf16.mxu0 0
        %1150 = vmatpush1.bf16.msra.mxu0 0
        %1151 = vmatprep.subr.bf16.mxu0 0
        %1152 = vmatpush1.bf16.msra.mxu0 0
        %1153 = vmatprep.subr.bf16.mxu0 0
        %1154 = vmatpush1.bf16.msra.mxu0 0
        %1155 = vmatprep.subr.bf16.mxu0 0
        %1156 = vmatpush1.bf16.msra.mxu0 0
        %1157 = vmatprep.subr.bf16.mxu0 0
        %1158 = vmatpush1.bf16.msra.mxu0 0
        %1159 = vmatprep.subr.bf16.mxu0 0
        %1160 = vmatpush1.bf16.msra.mxu0 0
        %1161 = vmatprep.subr.bf16.mxu0 0
        %1162 = vmatpush1.bf16.msra.mxu0 0
        %1163 = vmatprep.subr.bf16.mxu0 0
        %1164 = vmatpush1.bf16.msra.mxu0 0
        %1165 = vmatprep.mubr.bf16.mxu0 0
        %1166 = vmatmul.mubr.bf16.gmra.mrb[0].mxu0 %v1049
        %v1167 = vpop.f32.mrb[0].mxu0
        %v1168 = vadd.f32 0.0, %v1167
        %v1169 = vpop.f32.mrb[0].mxu0
        %v1170 = vadd.f32 0.0, %v1169
        %v1171 = vpop.f32.mrb[0].mxu0
        %v1172 = vadd.f32 0.0, %v1171
        %v1173 = vpop.f32.mrb[0].mxu0
        %v1174 = vadd.f32 0.0, %v1173
        %1175 = vmatprep.mubr.bf16.mxu0 0
        %1176 = vmatmul.mubr.bf16.gmra.mrb[0].mxu0 %v1052
        %v1177 = vpop.f32.mrb[0].mxu0
        %v1178 = vadd.f32 0.0, %v1177
        %v1179 = vpop.f32.mrb[0].mxu0
        %v1180 = vadd.f32 0.0, %v1179
        %v1181 = vpop.f32.mrb[0].mxu0
        %v1182 = vadd.f32 0.0, %v1181
        %v1183 = vpop.f32.mrb[0].mxu0
        %v1184 = vadd.f32 0.0, %v1183
        %1185 = vmatprep.mubr.bf16.mxu0 0
        %1186 = vmatmul.mubr.bf16.gmra.mrb[0].mxu0 %v1055
        %v1187 = vpop.f32.mrb[0].mxu0
        %v1188 = vadd.f32 0.0, %v1187
        %v1189 = vpop.f32.mrb[0].mxu0
        %v1190 = vadd.f32 0.0, %v1189
        %v1191 = vpop.f32.mrb[0].mxu0
        %v1192 = vadd.f32 0.0, %v1191
        %v1193 = vpop.f32.mrb[0].mxu0
        %v1194 = vadd.f32 0.0, %v1193
        %1195 = vmatprep.mubr.bf16.mxu0 0
        %1196 = vmatmul.mubr.bf16.gmra.mrb[0].mxu0 %v1058
        %v1197 = vpop.f32.mrb[0].mxu0
        %v1198 = vadd.f32 0.0, %v1197
        %v1199 = vpop.f32.mrb[0].mxu0
        %v1200 = vadd.f32 0.0, %v1199
        %v1201 = vpop.f32.mrb[0].mxu0
        %v1202 = vadd.f32 0.0, %v1201
        %v1203 = vpop.f32.mrb[0].mxu0
        %v1204 = vadd.f32 0.0, %v1203
        %1205 = vdwg.mxu0
        %1206 = vmatprep.subr.bf16.mxu0 %v880
        %1207 = vmatpush1.bf16.msra.mxu0 %v879
        %1208 = vmatprep.subr.bf16.mxu0 %v888
        %1209 = vmatpush1.bf16.msra.mxu0 %v887
        %1210 = vmatprep.subr.bf16.mxu0 %v880
        %1211 = vmatpush1.bf16.msra.mxu0 %v879
        %1212 = vmatprep.subr.bf16.mxu0 %v888
        %1213 = vmatpush1.bf16.msra.mxu0 %v887
        %1214 = vmatprep.subr.bf16.mxu0 %v880
        %1215 = vmatpush1.bf16.msra.mxu0 %v879
        %1216 = vmatprep.subr.bf16.mxu0 %v888
        %1217 = vmatpush1.bf16.msra.mxu0 %v887
        %1218 = vmatprep.subr.bf16.mxu0 0
        %1219 = vmatpush1.bf16.msra.mxu0 0
        %1220 = vmatprep.subr.bf16.mxu0 0
        %1221 = vmatpush1.bf16.msra.mxu0 0
        %1222 = vmatprep.subr.bf16.mxu0 0
        %1223 = vmatpush1.bf16.msra.mxu0 0
        %1224 = vmatprep.subr.bf16.mxu0 0
        %1225 = vmatpush1.bf16.msra.mxu0 0
        %1226 = vmatprep.subr.bf16.mxu0 0
        %1227 = vmatpush1.bf16.msra.mxu0 0
        %1228 = vmatprep.subr.bf16.mxu0 0
        %1229 = vmatpush1.bf16.msra.mxu0 0
        %1230 = vmatprep.subr.bf16.mxu0 0
        %1231 = vmatpush1.bf16.msra.mxu0 0
        %1232 = vmatprep.subr.bf16.mxu0 0
        %1233 = vmatpush1.bf16.msra.mxu0 0
        %1234 = vmatprep.subr.bf16.mxu0 0
        %1235 = vmatpush1.bf16.msra.mxu0 0
        %1236 = vmatprep.subr.bf16.mxu0 0
        %1237 = vmatpush1.bf16.msra.mxu0 0
        %1238 = vmatprep.mubr.bf16.mxu0 0
        %1239 = vmatmul.mubr.bf16.gmra.mrb[0].mxu0 %v1049
        %v1240 = vpop.f32.mrb[0].mxu0
        %v1241 = vadd.f32 0.0, %v1240
        %v1242 = vpop.f32.mrb[0].mxu0
        %v1243 = vadd.f32 0.0, %v1242
        %v1244 = vpop.f32.mrb[0].mxu0
        %v1245 = vadd.f32 0.0, %v1244
        %v1246 = vpop.f32.mrb[0].mxu0
        %v1247 = vadd.f32 0.0, %v1246
        %1248 = vmatprep.mubr.bf16.mxu0 0
        %1249 = vmatmul.mubr.bf16.gmra.mrb[0].mxu0 %v1052
        %v1250 = vpop.f32.mrb[0].mxu0
        %v1251 = vadd.f32 0.0, %v1250
        %v1252 = vpop.f32.mrb[0].mxu0
        %v1253 = vadd.f32 0.0, %v1252
        %v1254 = vpop.f32.mrb[0].mxu0
        %v1255 = vadd.f32 0.0, %v1254
        %v1256 = vpop.f32.mrb[0].mxu0
        %v1257 = vadd.f32 0.0, %v1256
        %1258 = vmatprep.mubr.bf16.mxu0 0
        %1259 = vmatmul.mubr.bf16.gmra.mrb[0].mxu0 %v1055
        %v1260 = vpop.f32.mrb[0].mxu0
        %v1261 = vadd.f32 0.0, %v1260
        %v1262 = vpop.f32.mrb[0].mxu0
        %v1263 = vadd.f32 0.0, %v1262
        %v1264 = vpop.f32.mrb[0].mxu0
        %v1265 = vadd.f32 0.0, %v1264
        %v1266 = vpop.f32.mrb[0].mxu0
        %v1267 = vadd.f32 0.0, %v1266
        %1268 = vmatprep.mubr.bf16.mxu0 0
        %1269 = vmatmul.mubr.bf16.gmra.mrb[0].mxu0 %v1058
        %v1270 = vpop.f32.mrb[0].mxu0
        %v1271 = vadd.f32 0.0, %v1270
        %v1272 = vpop.f32.mrb[0].mxu0
        %v1273 = vadd.f32 0.0, %v1272
        %v1274 = vpop.f32.mrb[0].mxu0
        %v1275 = vadd.f32 0.0, %v1274
        %v1276 = vpop.f32.mrb[0].mxu0
        %v1277 = vadd.f32 0.0, %v1276
        %1278 = vdwg.mxu0
        %1279 = vmatprep.subr.bf16.mxu0 %v882
        %1280 = vmatpush1.bf16.msra.mxu0 %v881
        %1281 = vmatprep.subr.bf16.mxu0 %v890
        %1282 = vmatpush1.bf16.msra.mxu0 %v889
        %1283 = vmatprep.subr.bf16.mxu0 %v882
        %1284 = vmatpush1.bf16.msra.mxu0 %v881
        %1285 = vmatprep.subr.bf16.mxu0 %v890
        %1286 = vmatpush1.bf16.msra.mxu0 %v889
        %1287 = vmatprep.subr.bf16.mxu0 %v882
        %1288 = vmatpush1.bf16.msra.mxu0 %v881
        %1289 = vmatprep.subr.bf16.mxu0 %v890
        %1290 = vmatpush1.bf16.msra.mxu0 %v889
        %1291 = vmatprep.subr.bf16.mxu0 0
        %1292 = vmatpush1.bf16.msra.mxu0 0
        %1293 = vmatprep.subr.bf16.mxu0 0
        %1294 = vmatpush1.bf16.msra.mxu0 0
        %1295 = vmatprep.subr.bf16.mxu0 0
        %1296 = vmatpush1.bf16.msra.mxu0 0
        %1297 = vmatprep.subr.bf16.mxu0 0
        %1298 = vmatpush1.bf16.msra.mxu0 0
        %1299 = vmatprep.subr.bf16.mxu0 0
        %1300 = vmatpush1.bf16.msra.mxu0 0
        %1301 = vmatprep.subr.bf16.mxu0 0
        %1302 = vmatpush1.bf16.msra.mxu0 0
        %1303 = vmatprep.subr.bf16.mxu0 0
        %1304 = vmatpush1.bf16.msra.mxu0 0
        %1305 = vmatprep.subr.bf16.mxu0 0
        %1306 = vmatpush1.bf16.msra.mxu0 0
        %1307 = vmatprep.subr.bf16.mxu0 0
        %1308 = vmatpush1.bf16.msra.mxu0 0
        %1309 = vmatprep.subr.bf16.mxu0 0
        %1310 = vmatpush1.bf16.msra.mxu0 0
        %1311 = vmatprep.mubr.bf16.mxu0 0
        %1312 = vmatmul.mubr.bf16.gmra.mrb[0].mxu0 %v1049
        %v1313 = vpop.f32.mrb[0].mxu0
        %v1314 = vadd.f32 0.0, %v1313
        %v1315 = vpop.f32.mrb[0].mxu0
        %v1316 = vadd.f32 0.0, %v1315
        %v1317 = vpop.f32.mrb[0].mxu0
        %v1318 = vadd.f32 0.0, %v1317
        %v1319 = vpop.f32.mrb[0].mxu0
        %v1320 = vadd.f32 0.0, %v1319
        %1321 = vmatprep.mubr.bf16.mxu0 0
        %1322 = vmatmul.mubr.bf16.gmra.mrb[0].mxu0 %v1052
        %v1323 = vpop.f32.mrb[0].mxu0
        %v1324 = vadd.f32 0.0, %v1323
        %v1325 = vpop.f32.mrb[0].mxu0
        %v1326 = vadd.f32 0.0, %v1325
        %v1327 = vpop.f32.mrb[0].mxu0
        %v1328 = vadd.f32 0.0, %v1327
        %v1329 = vpop.f32.mrb[0].mxu0
        %v1330 = vadd.f32 0.0, %v1329
        %1331 = vmatprep.mubr.bf16.mxu0 0
        %1332 = vmatmul.mubr.bf16.gmra.mrb[0].mxu0 %v1055
        %v1333 = vpop.f32.mrb[0].mxu0
        %v1334 = vadd.f32 0.0, %v1333
        %v1335 = vpop.f32.mrb[0].mxu0
        %v1336 = vadd.f32 0.0, %v1335
        %v1337 = vpop.f32.mrb[0].mxu0
        %v1338 = vadd.f32 0.0, %v1337
        %v1339 = vpop.f32.mrb[0].mxu0
        %v1340 = vadd.f32 0.0, %v1339
        %1341 = vmatprep.mubr.bf16.mxu0 0
        %1342 = vmatmul.mubr.bf16.gmra.mrb[0].mxu0 %v1058
        %v1343 = vpop.f32.mrb[0].mxu0
        %v1344 = vadd.f32 0.0, %v1343
        %v1345 = vpop.f32.mrb[0].mxu0
        %v1346 = vadd.f32 0.0, %v1345
        %v1347 = vpop.f32.mrb[0].mxu0
        %v1348 = vadd.f32 0.0, %v1347
        %v1349 = vpop.f32.mrb[0].mxu0
        %v1350 = vadd.f32 0.0, %v1349
        %1351 = vdwg.mxu0
        %v1352 = vmul.f32 %v1095, %v987
        %v1353 = vmul.f32 %v1097, %v988
        %v1354 = vmul.f32 %v1168, %v989
        %v1355 = vmul.f32 %v1170, %v990
        %v1356 = vmul.f32 %v1241, %v991
        %v1357 = vmul.f32 %v1243, %v992
        %v1358 = vmul.f32 %v1314, %v993
        %v1359 = vmul.f32 %v1316, %v994
        %v1360 = vmul.f32 %v1099, %v995
        %v1361 = vmul.f32 %v1101, %v996
        %v1362 = vmul.f32 %v1172, %v997
        %v1363 = vmul.f32 %v1174, %v998
        %v1364 = vmul.f32 %v1245, %v999
        %v1365 = vmul.f32 %v1247, %v1000
        %v1366 = vmul.f32 %v1318, %v1001
        %v1367 = vmul.f32 %v1320, %v1002
        %v1368 = vmul.f32 %v1105, %v1003
        %v1369 = vmul.f32 %v1107, %v1004
        %v1370 = vmul.f32 %v1178, %v1005
        %v1371 = vmul.f32 %v1180, %v1006
        %v1372 = vmul.f32 %v1251, %v1007
        %v1373 = vmul.f32 %v1253, %v1008
        %v1374 = vmul.f32 %v1324, %v1009
        %v1375 = vmul.f32 %v1326, %v1010
        %v1376 = vmul.f32 %v1109, %v1011
        %v1377 = vmul.f32 %v1111, %v1012
        %v1378 = vmul.f32 %v1182, %v1013
        %v1379 = vmul.f32 %v1184, %v1014
        %v1380 = vmul.f32 %v1255, %v1015
        %v1381 = vmul.f32 %v1257, %v1016
        %v1382 = vmul.f32 %v1328, %v1017
        %v1383 = vmul.f32 %v1330, %v1018
        %v1384 = vadd.f32 %v1352, %v1360
        %v1385 = vadd.f32 %v1384, %v1368
        %v1386 = vadd.f32 %v1385, %v1376
        %v1387 = vrot.slane %v1386, 4
        %v1388 = vadd.f32 %v1386, %v1387
        %v1389 = vrot.slane %v1388, 2
        %v1390 = vadd.f32 %v1388, %v1389
        %v1391 = vrot.slane %v1390, 1
        %v1392 = vadd.f32 %v1390, %v1391
        %v1393 = vadd.f32 %v1353, %v1361
        %v1394 = vadd.f32 %v1393, %v1369
        %v1395 = vadd.f32 %v1394, %v1377
        %v1396 = vrot.slane %v1395, 4
        %v1397 = vadd.f32 %v1395, %v1396
        %v1398 = vrot.slane %v1397, 2
        %v1399 = vadd.f32 %v1397, %v1398
        %v1400 = vrot.slane %v1399, 1
        %v1401 = vadd.f32 %v1399, %v1400
        %v1402 = vadd.f32 %v1354, %v1362
        %v1403 = vadd.f32 %v1402, %v1370
        %v1404 = vadd.f32 %v1403, %v1378
        %v1405 = vrot.slane %v1404, 4
        %v1406 = vadd.f32 %v1404, %v1405
        %v1407 = vrot.slane %v1406, 2
        %v1408 = vadd.f32 %v1406, %v1407
        %v1409 = vrot.slane %v1408, 1
        %v1410 = vadd.f32 %v1408, %v1409
        %v1411 = vadd.f32 %v1355, %v1363
        %v1412 = vadd.f32 %v1411, %v1371
        %v1413 = vadd.f32 %v1412, %v1379
        %v1414 = vrot.slane %v1413, 4
        %v1415 = vadd.f32 %v1413, %v1414
        %v1416 = vrot.slane %v1415, 2
        %v1417 = vadd.f32 %v1415, %v1416
        %v1418 = vrot.slane %v1417, 1
        %v1419 = vadd.f32 %v1417, %v1418
        %v1420 = vadd.f32 %v1356, %v1364
        %v1421 = vadd.f32 %v1420, %v1372
        %v1422 = vadd.f32 %v1421, %v1380
        %v1423 = vrot.slane %v1422, 4
        %v1424 = vadd.f32 %v1422, %v1423
        %v1425 = vrot.slane %v1424, 2
        %v1426 = vadd.f32 %v1424, %v1425
        %v1427 = vrot.slane %v1426, 1
        %v1428 = vadd.f32 %v1426, %v1427
        %v1429 = vadd.f32 %v1357, %v1365
        %v1430 = vadd.f32 %v1429, %v1373
        %v1431 = vadd.f32 %v1430, %v1381
        %v1432 = vrot.slane %v1431, 4
        %v1433 = vadd.f32 %v1431, %v1432
        %v1434 = vrot.slane %v1433, 2
        %v1435 = vadd.f32 %v1433, %v1434
        %v1436 = vrot.slane %v1435, 1
        %v1437 = vadd.f32 %v1435, %v1436
        %v1438 = vadd.f32 %v1358, %v1366
        %v1439 = vadd.f32 %v1438, %v1374
        %v1440 = vadd.f32 %v1439, %v1382
        %v1441 = vrot.slane %v1440, 4
        %v1442 = vadd.f32 %v1440, %v1441
        %v1443 = vrot.slane %v1442, 2
        %v1444 = vadd.f32 %v1442, %v1443
        %v1445 = vrot.slane %v1444, 1
        %v1446 = vadd.f32 %v1444, %v1445
        %v1447 = vadd.f32 %v1359, %v1367
        %v1448 = vadd.f32 %v1447, %v1375
        %v1449 = vadd.f32 %v1448, %v1383
        %v1450 = vrot.slane %v1449, 4
        %v1451 = vadd.f32 %v1449, %v1450
        %v1452 = vrot.slane %v1451, 2
        %v1453 = vadd.f32 %v1451, %v1452
        %v1454 = vrot.slane %v1453, 1
        %v1455 = vadd.f32 %v1453, %v1454
        %v1456 = vmul.f32 %v1115, %v987
        %v1457 = vmul.f32 %v1117, %v988
        %v1458 = vmul.f32 %v1188, %v989
        %v1459 = vmul.f32 %v1190, %v990
        %v1460 = vmul.f32 %v1261, %v991
        %v1461 = vmul.f32 %v1263, %v992
        %v1462 = vmul.f32 %v1334, %v993
        %v1463 = vmul.f32 %v1336, %v994
        %v1464 = vmul.f32 %v1119, %v995
        %v1465 = vmul.f32 %v1121, %v996
        %v1466 = vmul.f32 %v1192, %v997
        %v1467 = vmul.f32 %v1194, %v998
        %v1468 = vmul.f32 %v1265, %v999
        %v1469 = vmul.f32 %v1267, %v1000
        %v1470 = vmul.f32 %v1338, %v1001
        %v1471 = vmul.f32 %v1340, %v1002
        %v1472 = vmul.f32 %v1125, %v1003
        %v1473 = vmul.f32 %v1127, %v1004
        %v1474 = vmul.f32 %v1198, %v1005
        %v1475 = vmul.f32 %v1200, %v1006
        %v1476 = vmul.f32 %v1271, %v1007
        %v1477 = vmul.f32 %v1273, %v1008
        %v1478 = vmul.f32 %v1344, %v1009
        %v1479 = vmul.f32 %v1346, %v1010
        %v1480 = vmul.f32 %v1129, %v1011
        %v1481 = vmul.f32 %v1131, %v1012
        %v1482 = vmul.f32 %v1202, %v1013
        %v1483 = vmul.f32 %v1204, %v1014
        %v1484 = vmul.f32 %v1275, %v1015
        %v1485 = vmul.f32 %v1277, %v1016
        %v1486 = vmul.f32 %v1348, %v1017
        %v1487 = vmul.f32 %v1350, %v1018
        %v1488 = vadd.f32 %v1456, %v1464
        %v1489 = vadd.f32 %v1488, %v1472
        %v1490 = vadd.f32 %v1489, %v1480
        %v1491 = vrot.slane %v1490, 4
        %v1492 = vadd.f32 %v1490, %v1491
        %v1493 = vrot.slane %v1492, 2
        %v1494 = vadd.f32 %v1492, %v1493
        %v1495 = vrot.slane %v1494, 1
        %v1496 = vadd.f32 %v1494, %v1495
        %v1497 = vadd.f32 %v1457, %v1465
        %v1498 = vadd.f32 %v1497, %v1473
        %v1499 = vadd.f32 %v1498, %v1481
        %v1500 = vrot.slane %v1499, 4
        %v1501 = vadd.f32 %v1499, %v1500
        %v1502 = vrot.slane %v1501, 2
        %v1503 = vadd.f32 %v1501, %v1502
        %v1504 = vrot.slane %v1503, 1
        %v1505 = vadd.f32 %v1503, %v1504
        %v1506 = vadd.f32 %v1458, %v1466
        %v1507 = vadd.f32 %v1506, %v1474
        %v1508 = vadd.f32 %v1507, %v1482
        %v1509 = vrot.slane %v1508, 4
        %v1510 = vadd.f32 %v1508, %v1509
        %v1511 = vrot.slane %v1510, 2
        %v1512 = vadd.f32 %v1510, %v1511
        %v1513 = vrot.slane %v1512, 1
        %v1514 = vadd.f32 %v1512, %v1513
        %v1515 = vadd.f32 %v1459, %v1467
        %v1516 = vadd.f32 %v1515, %v1475
        %v1517 = vadd.f32 %v1516, %v1483
        %v1518 = vrot.slane %v1517, 4
        %v1519 = vadd.f32 %v1517, %v1518
        %v1520 = vrot.slane %v1519, 2
        %v1521 = vadd.f32 %v1519, %v1520
        %v1522 = vrot.slane %v1521, 1
        %v1523 = vadd.f32 %v1521, %v1522
        %v1524 = vadd.f32 %v1460, %v1468
        %v1525 = vadd.f32 %v1524, %v1476
        %v1526 = vadd.f32 %v1525, %v1484
        %v1527 = vrot.slane %v1526, 4
        %v1528 = vadd.f32 %v1526, %v1527
        %v1529 = vrot.slane %v1528, 2
        %v1530 = vadd.f32 %v1528, %v1529
        %v1531 = vrot.slane %v1530, 1
        %v1532 = vadd.f32 %v1530, %v1531
        %v1533 = vadd.f32 %v1461, %v1469
        %v1534 = vadd.f32 %v1533, %v1477
        %v1535 = vadd.f32 %v1534, %v1485
        %v1536 = vrot.slane %v1535, 4
        %v1537 = vadd.f32 %v1535, %v1536
        %v1538 = vrot.slane %v1537, 2
        %v1539 = vadd.f32 %v1537, %v1538
        %v1540 = vrot.slane %v1539, 1
        %v1541 = vadd.f32 %v1539, %v1540
        %v1542 = vadd.f32 %v1462, %v1470
        %v1543 = vadd.f32 %v1542, %v1478
        %v1544 = vadd.f32 %v1543, %v1486
        %v1545 = vrot.slane %v1544, 4
        %v1546 = vadd.f32 %v1544, %v1545
        %v1547 = vrot.slane %v1546, 2
        %v1548 = vadd.f32 %v1546, %v1547
        %v1549 = vrot.slane %v1548, 1
        %v1550 = vadd.f32 %v1548, %v1549
        %v1551 = vadd.f32 %v1463, %v1471
        %v1552 = vadd.f32 %v1551, %v1479
        %v1553 = vadd.f32 %v1552, %v1487
        %v1554 = vrot.slane %v1553, 4
        %v1555 = vadd.f32 %v1553, %v1554
        %v1556 = vrot.slane %v1555, 2
        %v1557 = vadd.f32 %v1555, %v1556
        %v1558 = vrot.slane %v1557, 1
        %v1559 = vadd.f32 %v1557, %v1558
        %v1560 = vmul.f32 %v731, %v1392
        %v1561 = vmul.f32 %v732, %v1401
        %v1562 = vmul.f32 %v733, %v1410
        %v1563 = vmul.f32 %v734, %v1419
        %v1564 = vmul.f32 %v735, %v1428
        %v1565 = vmul.f32 %v736, %v1437
        %v1566 = vmul.f32 %v737, %v1446
        %v1567 = vmul.f32 %v738, %v1455
        %v1568 = vand.u32 2147483647, %v1560
        %v1569 = vand.u32 2147483647, %v1561
        %v1570 = vand.u32 2147483647, %v1562
        %v1571 = vand.u32 2147483647, %v1563
        %v1572 = vand.u32 2147483647, %v1564
        %v1573 = vand.u32 2147483647, %v1565
        %v1574 = vand.u32 2147483647, %v1566
        %v1575 = vand.u32 2147483647, %v1567
        %vm1576 = vcmask 1040384
        %v1577 = vsel %vm1576, %v1568, 0.0
        %1578 = vadd.xlane.f32.xlu0 %v1577
        %v1579 = vpop.xlane.xlu0 %1578
        %v1580 = vsel %vm1576, %v1569, 0.0
        %1581 = vadd.xlane.f32.xlu0 %v1580
        %v1582 = vpop.xlane.xlu0 %1581
        %v1583 = vsel %vm1576, %v1570, 0.0
        %1584 = vadd.xlane.f32.xlu0 %v1583
        %v1585 = vpop.xlane.xlu0 %1584
        %v1586 = vsel %vm1576, %v1571, 0.0
        %1587 = vadd.xlane.f32.xlu0 %v1586
        %v1588 = vpop.xlane.xlu0 %1587
        %v1589 = vsel %vm1576, %v1572, 0.0
        %1590 = vadd.xlane.f32.xlu0 %v1589
        %v1591 = vpop.xlane.xlu0 %1590
        %v1592 = vsel %vm1576, %v1573, 0.0
        %1593 = vadd.xlane.f32.xlu0 %v1592
        %v1594 = vpop.xlane.xlu0 %1593
        %v1595 = vsel %vm1576, %v1574, 0.0
        %1596 = vadd.xlane.f32.xlu0 %v1595
        %v1597 = vpop.xlane.xlu0 %1596
        %v1598 = vsel %vm1576, %v1575, 0.0
        %1599 = vadd.xlane.f32.xlu0 %v1598
        %v1600 = vpop.xlane.xlu0 %1599
        %v1601 = vld [vmem:[%s250] sm:$0x77]
        %v1602 = vld [vmem:[%s250 + $0x8] sm:$0x77]
        %v1603 = vld [vmem:[%s250 + $0x10] sm:$0x77]
        %v1604 = vld [vmem:[%s250 + $0x18] sm:$0x77]
        %v1609 = vrot.slane %v1601, 5
        %v1610 = vrot.slane %v1609, 4
        %v1611 = vrot.slane %v1602, 5
        %v1612 = vrot.slane %v1611, 4
        %v1613 = vrot.slane %v1603, 5
        %v1614 = vrot.slane %v1613, 4
        %v1615 = vrot.slane %v1604, 5
        %v1616 = vrot.slane %v1615, 4
        %v1621 = vmul.f32 %v1601, %v1610
        %v1622 = vmul.f32 %v1602, %v1612
        %v1623 = vmul.f32 %v1603, %v1614
        %v1624 = vmul.f32 %v1604, %v1616
        %v1629 = vlaneseq
        %v1630 = vshrl.u32 %v1629, 7
        %v1631 = vsub.s32 0, %v1630
        %v1632 = vrot.slane %v1621, %v1631
        %v1633 = vlaneseq
        %v1634 = vshrl.u32 %v1633, 7
        %v1635 = vsub.s32 4, %v1634
        %v1636 = vrot.slane %v1621, %v1635
        %v1637 = vlaneseq
        %v1638 = vshrl.u32 %v1637, 7
        %v1639 = vsub.s32 0, %v1638
        %v1640 = vrot.slane %v1622, %v1639
        %v1641 = vlaneseq
        %v1642 = vshrl.u32 %v1641, 7
        %v1643 = vsub.s32 4, %v1642
        %v1644 = vrot.slane %v1622, %v1643
        %v1645 = vlaneseq
        %v1646 = vshrl.u32 %v1645, 7
        %v1647 = vsub.s32 0, %v1646
        %v1648 = vrot.slane %v1623, %v1647
        %v1649 = vlaneseq
        %v1650 = vshrl.u32 %v1649, 7
        %v1651 = vsub.s32 4, %v1650
        %v1652 = vrot.slane %v1623, %v1651
        %v1653 = vlaneseq
        %v1654 = vshrl.u32 %v1653, 7
        %v1655 = vsub.s32 0, %v1654
        %v1656 = vrot.slane %v1624, %v1655
        %v1657 = vlaneseq
        %v1658 = vshrl.u32 %v1657, 7
        %v1659 = vsub.s32 4, %v1658
        %v1660 = vrot.slane %v1624, %v1659
        %v1669 = vmul.f32 %v1560, %v1632
        %v1670 = vmul.f32 %v1561, %v1636
        %v1671 = vmul.f32 %v1562, %v1640
        %v1672 = vmul.f32 %v1563, %v1644
        %v1673 = vmul.f32 %v1564, %v1648
        %v1674 = vmul.f32 %v1565, %v1652
        %v1675 = vmul.f32 %v1566, %v1656
        %v1676 = vmul.f32 %v1567, %v1660
        %v1677 = vlaneseq
        %v1678 = vshrl.u32 %v1677, 7
        %v1679 = vsub.s32 0, %v1678
        %v1680 = vrot.slane %v1601, %v1679
        %v1681 = vlaneseq
        %v1682 = vshrl.u32 %v1681, 7
        %v1683 = vsub.s32 4, %v1682
        %v1684 = vrot.slane %v1601, %v1683
        %v1685 = vlaneseq
        %v1686 = vshrl.u32 %v1685, 7
        %v1687 = vsub.s32 0, %v1686
        %v1688 = vrot.slane %v1602, %v1687
        %v1689 = vlaneseq
        %v1690 = vshrl.u32 %v1689, 7
        %v1691 = vsub.s32 4, %v1690
        %v1692 = vrot.slane %v1602, %v1691
        %v1693 = vlaneseq
        %v1694 = vshrl.u32 %v1693, 7
        %v1695 = vsub.s32 0, %v1694
        %v1696 = vrot.slane %v1603, %v1695
        %v1697 = vlaneseq
        %v1698 = vshrl.u32 %v1697, 7
        %v1699 = vsub.s32 4, %v1698
        %v1700 = vrot.slane %v1603, %v1699
        %v1701 = vlaneseq
        %v1702 = vshrl.u32 %v1701, 7
        %v1703 = vsub.s32 0, %v1702
        %v1704 = vrot.slane %v1604, %v1703
        %v1705 = vlaneseq
        %v1706 = vshrl.u32 %v1705, 7
        %v1707 = vsub.s32 4, %v1706
        %v1708 = vrot.slane %v1604, %v1707
        %v1717 = vmul.f32 %v1560, %v1680
        %v1718 = vmul.f32 %v1561, %v1684
        %v1719 = vmul.f32 %v1562, %v1688
        %v1720 = vmul.f32 %v1563, %v1692
        %v1721 = vmul.f32 %v1564, %v1696
        %v1722 = vmul.f32 %v1565, %v1700
        %v1723 = vmul.f32 %v1566, %v1704
        %v1724 = vmul.f32 %v1567, %v1708
        %v1725 = vmul.f32 %v731, %v1496
        %v1726 = vmul.f32 %v732, %v1505
        %v1727 = vmul.f32 %v733, %v1514
        %v1728 = vmul.f32 %v734, %v1523
        %v1729 = vmul.f32 %v735, %v1532
        %v1730 = vmul.f32 %v736, %v1541
        %v1731 = vmul.f32 %v737, %v1550
        %v1732 = vmul.f32 %v738, %v1559
        %v1733 = vlaneseq
        %v1734 = vshrl.u32 %v1733, 7
        %v1735 = vsub.s32 1, %v1734
        %v1736 = vrot.slane %v1601, %v1735
        %v1737 = vlaneseq
        %v1738 = vshrl.u32 %v1737, 7
        %v1739 = vsub.s32 5, %v1738
        %v1740 = vrot.slane %v1601, %v1739
        %v1741 = vlaneseq
        %v1742 = vshrl.u32 %v1741, 7
        %v1743 = vsub.s32 1, %v1742
        %v1744 = vrot.slane %v1602, %v1743
        %v1745 = vlaneseq
        %v1746 = vshrl.u32 %v1745, 7
        %v1747 = vsub.s32 5, %v1746
        %v1748 = vrot.slane %v1602, %v1747
        %v1749 = vlaneseq
        %v1750 = vshrl.u32 %v1749, 7
        %v1751 = vsub.s32 1, %v1750
        %v1752 = vrot.slane %v1603, %v1751
        %v1753 = vlaneseq
        %v1754 = vshrl.u32 %v1753, 7
        %v1755 = vsub.s32 5, %v1754
        %v1756 = vrot.slane %v1603, %v1755
        %v1757 = vlaneseq
        %v1758 = vshrl.u32 %v1757, 7
        %v1759 = vsub.s32 1, %v1758
        %v1760 = vrot.slane %v1604, %v1759
        %v1761 = vlaneseq
        %v1762 = vshrl.u32 %v1761, 7
        %v1763 = vsub.s32 5, %v1762
        %v1764 = vrot.slane %v1604, %v1763
        %v1773 = vmul.f32 %v1725, %v1736
        %v1774 = vmul.f32 %v1726, %v1740
        %v1775 = vmul.f32 %v1727, %v1744
        %v1776 = vmul.f32 %v1728, %v1748
        %v1777 = vmul.f32 %v1729, %v1752
        %v1778 = vmul.f32 %v1730, %v1756
        %v1779 = vmul.f32 %v1731, %v1760
        %v1780 = vmul.f32 %v1732, %v1764
        %v1781 = vmul.f32 %v1601, 0.99
        %v1782 = vmul.f32 %v1602, 0.99
        %v1783 = vmul.f32 %v1603, 0.99
        %v1784 = vmul.f32 %v1604, 0.99
        %v1785 = vand.u32 2147483647, %v1669
        %v1786 = vand.u32 2147483647, %v1670
        %v1787 = vand.u32 2147483647, %v1671
        %v1788 = vand.u32 2147483647, %v1672
        %v1789 = vand.u32 2147483647, %v1673
        %v1790 = vand.u32 2147483647, %v1674
        %v1791 = vand.u32 2147483647, %v1675
        %v1792 = vand.u32 2147483647, %v1676
        %v1793 = vmul.f32 %v1785, 0.01
        %v1794 = vmul.f32 %v1786, 0.01
        %v1795 = vmul.f32 %v1787, 0.01
        %v1796 = vmul.f32 %v1788, 0.01
        %v1797 = vmul.f32 %v1789, 0.01
        %v1798 = vmul.f32 %v1790, 0.01
        %v1799 = vmul.f32 %v1791, 0.01
        %v1800 = vmul.f32 %v1792, 0.01
        %v1809 = vcombine.low %v1793, %v1794
        %v1810 = vcombine.low %v1795, %v1796
        %v1811 = vcombine.low %v1797, %v1798
        %v1812 = vcombine.low %v1799, %v1800
        %v1813 = vrot.slane %v1809, 6
        %v1814 = vrot.slane %v1810, 6
        %v1815 = vrot.slane %v1811, 6
        %v1816 = vrot.slane %v1812, 6
        %v1821 = vadd.f32 %v1781, %v1813
        %v1822 = vadd.f32 %v1782, %v1814
        %v1823 = vadd.f32 %v1783, %v1815
        %v1824 = vadd.f32 %v1784, %v1816
        %v1825 = vlaneseq
        %v1826 = vshrl.u32 %v1825, 7
        %v1827 = vsub.s32 1, %v1826
        %v1828 = vrot.slane %v277, %v1827
        %v1829 = vlaneseq
        %v1830 = vshrl.u32 %v1829, 7
        %v1831 = vsub.s32 5, %v1830
        %v1832 = vrot.slane %v277, %v1831
        %v1833 = vlaneseq
        %v1834 = vshrl.u32 %v1833, 7
        %v1835 = vsub.s32 1, %v1834
        %v1836 = vrot.slane %v278, %v1835
        %v1837 = vlaneseq
        %v1838 = vshrl.u32 %v1837, 7
        %v1839 = vsub.s32 5, %v1838
        %v1840 = vrot.slane %v278, %v1839
        %v1841 = vlaneseq
        %v1842 = vshrl.u32 %v1841, 7
        %v1843 = vsub.s32 1, %v1842
        %v1844 = vrot.slane %v279, %v1843
        %v1845 = vlaneseq
        %v1846 = vshrl.u32 %v1845, 7
        %v1847 = vsub.s32 5, %v1846
        %v1848 = vrot.slane %v279, %v1847
        %v1849 = vlaneseq
        %v1850 = vshrl.u32 %v1849, 7
        %v1851 = vsub.s32 1, %v1850
        %v1852 = vrot.slane %v280, %v1851
        %v1853 = vlaneseq
        %v1854 = vshrl.u32 %v1853, 7
        %v1855 = vsub.s32 5, %v1854
        %v1856 = vrot.slane %v280, %v1855
        %v1857 = vsel %vm1576, %v293, %v1828
        %v1858 = vsel %vm1576, %v297, %v1832
        %v1859 = vsel %vm1576, %v301, %v1836
        %v1860 = vsel %vm1576, %v305, %v1840
        %v1861 = vsel %vm1576, %v309, %v1844
        %v1862 = vsel %vm1576, %v313, %v1848
        %v1863 = vsel %vm1576, %v317, %v1852
        %v1864 = vsel %vm1576, %v321, %v1856
        %v1865 = vcombine.low %v1857, %v1858
        %v1866 = vcombine.low %v1859, %v1860
        %v1868 = vunpack.c.l.s4 1983009808
        %v1869 = vunpack.c.0.s8 %v1868
        %v1870 = vlaneseq
        %v1871 = vshrl.u32 %v1870, 7
        %v1872 = vsub.s32 %v1869, %v1871
        %v1873 = vrot.slane %v1865, %v1872
        %v1875 = vunpack.c.l.s4 1983009808
        %v1876 = vunpack.c.0.s8 %v1875
        %v1877 = vlaneseq
        %v1878 = vshrl.u32 %v1877, 7
        %v1879 = vsub.s32 %v1876, %v1878
        %v1880 = vrot.slane %v1866, %v1879
        %v1881 = vcombine.low %v1873, %v1880
        %v1882 = vcombine.low %v1861, %v1862
        %v1883 = vcombine.low %v1863, %v1864
        %v1885 = vunpack.c.l.s4 1983009808
        %v1886 = vunpack.c.0.s8 %v1885
        %v1887 = vlaneseq
        %v1888 = vshrl.u32 %v1887, 7
        %v1889 = vsub.s32 %v1886, %v1888
        %v1890 = vrot.slane %v1882, %v1889
        %v1892 = vunpack.c.l.s4 1983009808
        %v1893 = vunpack.c.0.s8 %v1892
        %v1894 = vlaneseq
        %v1895 = vshrl.u32 %v1894, 7
        %v1896 = vsub.s32 %v1893, %v1895
        %v1897 = vrot.slane %v1883, %v1896
        %v1898 = vcombine.low %v1890, %v1897
        %1899 = vst [vmem:[%s233] sm:$0xff] %v1881
        %1900 = vst [vmem:[%s233 + $0x8] sm:$0xff] %v1898
        %v1909 = vrot.slane %v1717, 2
        %v1910 = vrot.slane %v1718, 2
        %v1911 = vrot.slane %v1719, 2
        %v1912 = vrot.slane %v1720, 2
        %v1913 = vrot.slane %v1721, 2
        %v1914 = vrot.slane %v1722, 2
        %v1915 = vrot.slane %v1723, 2
        %v1916 = vrot.slane %v1724, 2
        %v1933 = vrot.slane %v1773, 6
        %v1934 = vrot.slane %v1774, 6
        %v1935 = vrot.slane %v1775, 6
        %v1936 = vrot.slane %v1776, 6
        %v1937 = vrot.slane %v1777, 6
        %v1938 = vrot.slane %v1778, 6
        %v1939 = vrot.slane %v1779, 6
        %v1940 = vrot.slane %v1780, 6
        %v1953 = vlaneseq
        %v1954 = vshrl.u32 %v1953, 7
        %v1955 = vsub.s32 2, %v1954
        %v1956 = vrot.slane %v1821, %v1955
        %v1957 = vlaneseq
        %v1958 = vshrl.u32 %v1957, 7
        %v1959 = vsub.s32 6, %v1958
        %v1960 = vrot.slane %v1821, %v1959
        %v1961 = vlaneseq
        %v1962 = vshrl.u32 %v1961, 7
        %v1963 = vsub.s32 2, %v1962
        %v1964 = vrot.slane %v1822, %v1963
        %v1965 = vlaneseq
        %v1966 = vshrl.u32 %v1965, 7
        %v1967 = vsub.s32 6, %v1966
        %v1968 = vrot.slane %v1822, %v1967
        %v1969 = vlaneseq
        %v1970 = vshrl.u32 %v1969, 7
        %v1971 = vsub.s32 2, %v1970
        %v1972 = vrot.slane %v1823, %v1971
        %v1973 = vlaneseq
        %v1974 = vshrl.u32 %v1973, 7
        %v1975 = vsub.s32 6, %v1974
        %v1976 = vrot.slane %v1823, %v1975
        %v1977 = vlaneseq
        %v1978 = vshrl.u32 %v1977, 7
        %v1979 = vsub.s32 2, %v1978
        %v1980 = vrot.slane %v1824, %v1979
        %v1981 = vlaneseq
        %v1982 = vshrl.u32 %v1981, 7
        %v1983 = vsub.s32 6, %v1982
        %v1984 = vrot.slane %v1824, %v1983
        %v2001 = vrot.slane %v1579, 4
        %v2002 = vrot.slane %v1582, 4
        %v2003 = vrot.slane %v1585, 4
        %v2004 = vrot.slane %v1588, 4
        %v2005 = vrot.slane %v1591, 4
        %v2006 = vrot.slane %v1594, 4
        %v2007 = vrot.slane %v1597, 4
        %v2008 = vrot.slane %v1600, 4
        %v2017 = vsel %vm1576, %v1669, %v1909
        %v2018 = vsel %vm1576, %v1670, %v1910
        %v2019 = vsel %vm1576, %v1671, %v1911
        %v2020 = vsel %vm1576, %v1672, %v1912
        %v2021 = vsel %vm1576, %v1673, %v1913
        %v2022 = vsel %vm1576, %v1674, %v1914
        %v2023 = vsel %vm1576, %v1675, %v1915
        %v2024 = vsel %vm1576, %v1676, %v1916
        %vm2025 = vcmask 1041408
        %v2026 = vsel %vm2025, %v2017, %v1933
        %v2027 = vsel %vm2025, %v2018, %v1934
        %v2028 = vsel %vm2025, %v2019, %v1935
        %v2029 = vsel %vm2025, %v2020, %v1936
        %v2030 = vsel %vm2025, %v2021, %v1937
        %v2031 = vsel %vm2025, %v2022, %v1938
        %v2032 = vsel %vm2025, %v2023, %v1939
        %v2033 = vsel %vm2025, %v2024, %v1940
        %vm2034 = vcmask 1042432
        %v2035 = vsel %vm2034, %v2026, %v1956
        %v2036 = vsel %vm2034, %v2027, %v1960
        %v2037 = vsel %vm2034, %v2028, %v1964
        %v2038 = vsel %vm2034, %v2029, %v1968
        %v2039 = vsel %vm2034, %v2030, %v1972
        %v2040 = vsel %vm2034, %v2031, %v1976
        %v2041 = vsel %vm2034, %v2032, %v1980
        %v2042 = vsel %vm2034, %v2033, %v1984
        %vm2043 = vcmask 1043456
        %v2044 = vsel %vm2043, %v2035, %v2001
        %v2045 = vsel %vm2043, %v2036, %v2002
        %v2046 = vsel %vm2043, %v2037, %v2003
        %v2047 = vsel %vm2043, %v2038, %v2004
        %v2048 = vsel %vm2043, %v2039, %v2005
        %v2049 = vsel %vm2043, %v2040, %v2006
        %v2050 = vsel %vm2043, %v2041, %v2007
        %v2051 = vsel %vm2043, %v2042, %v2008
        %2052 = vst [vmem:[%s255] sm:$0x1f] %v2044
        %2053 = vst [vmem:[%s255 + $0x8] sm:$0x1f] %v2045
        %2054 = vst [vmem:[%s255 + $0x10] sm:$0x1f] %v2046
        %2055 = vst [vmem:[%s255 + $0x18] sm:$0x1f] %v2047
        %2056 = vst [vmem:[%s255 + $0x20] sm:$0x1f] %v2048
        %2057 = vst [vmem:[%s255 + $0x28] sm:$0x1f] %v2049
        %2058 = vst [vmem:[%s255 + $0x30] sm:$0x1f] %v2050
        %2059 = vst [vmem:[%s255 + $0x38] sm:$0x1f] %v2051
        %s2060 = sand.u32 %s122, 1
        %s2061 = scalar_lea.sflag [#allocation3], %s2060
        %s2062 = sand.u32 %s122, 1
        %s2063 = smul.addr %s2062, 16
        %s2064 = scalar_lea.vmem [#allocation2], %s2063
        %p2065 = scmp.lt.s32.totalorder %s20, 1
        %s2066 = scalar_select %p2065, %s20, 1
        %s2067 = smul.addr %s2066, 8
        %s2068 = smul.addr %s2067, 8
        %s2069 = scalar_lea.vmem %s5, %s2068
        // Predicated region
        $region37: #{tpu_custom_call.1} parent=35 // pred_check
          %p2070 = pneg %p132
        $region38: #{tpu_custom_call.1} parent=35 // pred_check_branch
          %2072 = sbr.rel (%p2070) target = $region40
        $region39: #{tpu_custom_call.1} parent=35 // pred_region
          %s2074 = ssub.s32 256, 256
          %2075 = vsyncadd %s2061, %s2074
          %s2076 = smul.addr %s20, 8
          %s2077 = smul.addr %s2076, 32
          %s2078 = scalar_lea.hbm %s4, %s2077
          %s2080 = sshll.u32 %s2064, 4
          %s2081 = int_to_ptr.vmem [resolvable:$true] %s2080
          %2083 = dma.vmem_to_hbm [thread:$0]  %s2081, 256, %s2078, %s2061
        $region40: #{tpu_custom_call.1} parent=35 // pred_fallthru
          _
        // Predicated region
        $region41: #{tpu_custom_call.1} parent=35 // pred_check
          %p2084 = pneg %p158
        $region42: #{tpu_custom_call.1} parent=35 // pred_check_branch
          %2086 = sbr.rel (%p2084) target = $region44
        $region43: #{tpu_custom_call.1} parent=35 // pred_region
          _
        $region44: #{tpu_custom_call.1} parent=35 // pred_fallthru
          _
      $region36: #{tpu_custom_call.1} parent=5 // pred_fallthru
        _
      %p2087 = scmp.le.s32.totalorder 2, %s15
      // Predicated region
      $region45: #{tpu_custom_call.1} parent=5 // pred_check
        %p2088 = pneg %p2087
      $region46: #{tpu_custom_call.1} parent=5 // pred_check_branch
        %2090 = sbr.rel (%p2088) target = $region48
      $region47: #{tpu_custom_call.1} parent=5 // pred_region
        %s2091 = ssub.s32 %s15, 2
        // Predicated region
        $region49: #{tpu_custom_call.1} parent=47 // pred_check
          %p2092 = pneg %p138
        $region50: #{tpu_custom_call.1} parent=47 // pred_check_branch
          %2094 = sbr.rel (%p2092) target = $region52
        $region51: #{tpu_custom_call.1} parent=47 // pred_region
          %s2095 = sand.u32 %s123, 1
          %s2096 = scalar_lea.sflag [#allocation3], %s2095
          %s2097 = sand.u32 %s123, 1
          %s2098 = smul.addr %s2097, 16
          %s2099 = scalar_lea.vmem [#allocation2], %s2098
          %2100 = dma.done %s2096, 256
        $region52: #{tpu_custom_call.1} parent=47 // pred_fallthru
          _
        // Predicated region
        $region53: #{tpu_custom_call.1} parent=47 // pred_check
          %p2101 = pneg %p164
        $region54: #{tpu_custom_call.1} parent=47 // pred_check_branch
          %2103 = sbr.rel (%p2101) target = $region56
        $region55: #{tpu_custom_call.1} parent=47 // pred_region
          %p2104 = scmp.lt.s32.totalorder %s21, 1
          %s2105 = scalar_select %p2104, %s21, 1
          %s2106 = smul.addr %s2105, 8
          %s2107 = smul.addr %s2106, 8
          %s2108 = scalar_lea.vmem %s5, %s2107
        $region56: #{tpu_custom_call.1} parent=47 // pred_fallthru
          _
      $region48: #{tpu_custom_call.1} parent=5 // pred_fallthru
        _
    $region6: #{tpu_custom_call.1} parent=1 // loop_footer
      %s19 = sadd.s32 1, %s15
    $region7: #{tpu_custom_call.1} parent=1 // loop_footer_branch
      %14 = sbr.rel target = $region3
    $region8: #{tpu_custom_call.1} parent=1 // loop_exit
      _
    %2109 = vsyncpa [#allocation3], 1
    %s2110 = scalar_lea.sflag [#allocation3], 1
    %2111 = vsyncpa %s2110, 1

</llo_original>
